<compile_context>
chip_gen: v7x
topology: tpu7x:2x2x1
jax: 0.10.0
libtpu: 0.0.40
codegen_flags: <defaults>
</compile_context>

<pallas_src>
import jax
import jax.numpy as jnp
from jax import lax
from jax.experimental import pallas as pl
from jax.experimental.pallas import tpu as pltpu


def _round_up(x, m):
    return (x + m - 1) // m * m


def _pad_cols(x, width):
    return jnp.pad(x, ((0, 0), (0, width - x.shape[1])))


def gnn_layer_kernel(idx_ref, obj_ref, tab_ref, wa_ref, ba_ref, wh_ref,
                     out_ref, acc_ref):
    e_step = pl.program_id(1)

    @pl.when(e_step == 0)
    def _():
        acc_ref[...] = jnp.zeros_like(acc_ref)

    tile_e = idx_ref.shape[0]
    tile_n = acc_ref.shape[0]
    in_pad = wh_ref.shape[0]
    n_rows = tab_ref.shape[0]

    # --- fused gather: one one-hot with three 1s per edge row -> ONE MXU push.
    # idx columns: 0 = sub, 1 = rel (pre-offset), 2 = r_idx (pre-offset).
    cols = lax.broadcasted_iota(jnp.int32, (tile_e, n_rows), 1)
    onehot = ((cols == idx_ref[:, 0:1]) |
              (cols == idx_ref[:, 1:2]) |
              (cols == idx_ref[:, 2:3])).astype(jnp.float32)
    fused = jnp.dot(onehot, tab_ref[...], preferred_element_type=jnp.float32)
    # fused[:, :in_pad] = hs + hr ; fused[:, in_pad:] = Ws(hs)+Wr(hr)+Wqr(h_qr)+bqr

    s = jnp.maximum(fused[:, in_pad:], 0.0)                         # ReLU
    logit = jnp.sum(s * wa_ref[...], axis=-1, keepdims=True) + ba_ref[...]
    alpha = jax.nn.sigmoid(logit)                                    # [tE, 1]
    msg = alpha * fused[:, :in_pad]                                  # [tE, IN_PAD]

    # --- scatter-sum over destination node: one-hot generated ALREADY TRANSPOSED
    #     ([tN, tE]) so the MXU contraction needs no XLU relayout.
    node0 = pl.program_id(0) * tile_n
    rows = lax.broadcasted_iota(jnp.int32, (tile_n, tile_e), 0) + node0
    onehot_t = (obj_ref[...] == rows).astype(jnp.float32)
    acc_ref[...] += jnp.dot(onehot_t, msg, preferred_element_type=jnp.float32)

    @pl.when(e_step == pl.num_programs(1) - 1)
    def _():
        # hidden_new = act(W_h(message_agg)); act = identity in the reference.
        out_ref[...] = jnp.dot(acc_ref[...], wh_ref[...],
                               preferred_element_type=jnp.float32)


def gnn_layer_pallas(q_rel, hidden, edges, n_node, params, *, tile_e=1024):
    in_dim = hidden.shape[1]
    attn_dim = params["Ws_attn"].shape[1]
    out_dim = params["W_h"].shape[1]

    IN_PAD = _round_up(in_dim, 128)
    ATTN_PAD = _round_up(attn_dim, 128)
    OUT_PAD = _round_up(out_dim, 128)

    # ---- per-edge index streams (only int32 flows per edge through HBM) ----
    sub = edges[:, 4].astype(jnp.int32)
    rel = edges[:, 2].astype(jnp.int32)
    ridx = edges[:, 0].astype(jnp.int32)
    obj = edges[:, 5].astype(jnp.int32)

    E = edges.shape[0]
    tile_e = max(128, min(tile_e, _round_up(E, 128)))
    E_pad = _round_up(E, tile_e)
    pad_e = E_pad - E
    sub = jnp.pad(sub, (0, pad_e))                       # padded edges hit valid rows
    rel = jnp.pad(rel, (0, pad_e))
    ridx = jnp.pad(ridx, (0, pad_e))
    obj = jnp.pad(obj, (0, pad_e), constant_values=-1)   # -1 never matches: dropped

    # ---- fused gather table (attention weights hoisted through the tables) ----
    n_hid = hidden.shape[0]
    n_rel_rows = params["rela_embed"].shape[0]
    n_qr = q_rel.shape[0]

    hid_cat = jnp.concatenate(
        [_pad_cols(hidden.astype(jnp.float32), IN_PAD),
         _pad_cols(hidden @ params["Ws_attn"], ATTN_PAD)], axis=1)
    rel_cat = jnp.concatenate(
        [_pad_cols(params["rela_embed"], IN_PAD),
         _pad_cols(params["rela_embed"] @ params["Wr_attn"], ATTN_PAD)], axis=1)
    qr_cat = jnp.concatenate(
        [jnp.zeros((n_qr, IN_PAD), jnp.float32),
         _pad_cols(params["rela_embed"][q_rel] @ params["Wqr_attn"]
                   + params["bqr"], ATTN_PAD)], axis=1)
    table = jnp.concatenate([hid_cat, rel_cat, qr_cat], axis=0)
    n_rows = table.shape[0]
    R_PAD = _round_up(n_rows, 128)               # lane-dense one-hot / aligned MXU K
    table = jnp.pad(table, ((0, R_PAD - n_rows), (0, 0))).astype(jnp.float32)
    # TODO(synk): scalar-prefetched row gather for the hidden block when n_hid is large.

    # pre-offset rel / r_idx so each indexes its own block of the fused table;
    # pack all three streams into one int32 array -> one DMA per edge step.
    idx_packed = jnp.stack(
        [sub, rel + n_hid, ridx + n_hid + n_rel_rows], axis=1).astype(jnp.int32)
    idx_packed = jnp.pad(idx_packed, ((0, 0), (0, 8 - idx_packed.shape[1])))
    obj_row = obj[None, :]                                          # [1, E_pad]

    wa = _pad_cols(params["w_alpha_w"].astype(jnp.float32), ATTN_PAD)   # [1, ATTN_PAD]
    ba = params["w_alpha_b"].astype(jnp.float32).reshape(1, 1)
    wh = jnp.zeros((IN_PAD, OUT_PAD), jnp.float32)
    wh = wh.at[:in_dim, :out_dim].set(params["W_h"].astype(jnp.float32))

    # ---- node tiling: big tiles so edge-side work isn't replicated per node tile;
    #      keep exactly 2 node tiles for mid-size graphs (v7x megacore), cap at 1024.
    N128 = _round_up(n_node, 128)
    if N128 <= 256:
        tile_n = N128
    elif N128 <= 2048:
        tile_n = _round_up((N128 + 1) // 2, 128)
    else:
        tile_n = 1024
    N_pad = _round_up(N128, tile_n)

    grid = (N_pad // tile_n, E_pad // tile_e)

    # ---- VMEM budget, re-derived per generation (v7x: 64 MiB, v5e/v6e: 128 MiB) ----
    consts_bytes = 4 * (table.size + wa.size + ba.size + wh.size)
    stream_bytes = 2 * 4 * (tile_e * 8 + tile_e)        # double-buffered idx + obj
    acc_bytes = 4 * tile_n * IN_PAD
    out_bytes = 2 * 4 * tile_n * OUT_PAD
    transient = 4 * (tile_e * R_PAD + tile_e * (IN_PAD + ATTN_PAD) + tile_n * tile_e)
    try:
        vmem_cap = int(pltpu.get_tpu_info().vmem_capacity_bytes)
    except Exception:
        vmem_cap = 64 * 1024 * 1024

    def build(single_buffer_consts):
        n_bufs = 1 if single_buffer_consts else 2
        need = (n_bufs * consts_bytes + stream_bytes + acc_bytes
                + out_bytes + transient)
        vmem_limit = int(min(max(int(need * 1.5) + (8 << 20), 32 << 20),
                             vmem_cap - (8 << 20)))

        const_kwargs = (dict(pipeline_mode=pl.Buffered(1))
                        if single_buffer_consts else {})

        def const_spec(shape):
            return pl.BlockSpec(shape, lambda n, e: (0,) * len(shape), **const_kwargs)

        return pl.pallas_call(
            gnn_layer_kernel,
            out_shape=jax.ShapeDtypeStruct((N_pad, OUT_PAD), jnp.float32),
            grid=grid,
            in_specs=[
                pl.BlockSpec((tile_e, 8), lambda n, e: (e, 0)),     # packed sub/rel/r_idx
                pl.BlockSpec((1, tile_e), lambda n, e: (0, e)),     # obj (row layout)
                const_spec(table.shape),                            # fused gather table
                const_spec(wa.shape),
                const_spec(ba.shape),
                const_spec(wh.shape),
            ],
            out_specs=pl.BlockSpec((tile_n, OUT_PAD), lambda n, e: (n, 0)),
            scratch_shapes=[pltpu.VMEM((tile_n, IN_PAD), jnp.float32)],
            compiler_params=pltpu.CompilerParams(
                dimension_semantics=("parallel", "arbitrary"),
                vmem_limit_bytes=vmem_limit),
        )

    try:
        # grid-invariant operands single-buffered (constant index_map => double
        # buffering buys nothing; halves their VMEM residency, matters on v7x).
        out_padded = build(True)(idx_packed, obj_row, table, wa, ba, wh)
    except Exception:
        # fallback for environments where pl.Buffered(1) is not accepted
        out_padded = build(False)(idx_packed, obj_row, table, wa, ba, wh)

    return out_padded[:n_node, :out_dim]


def gnn_layer_ref(q_rel, hidden, edges, n_node, params):
    """Pure-JAX reference mirroring the PyTorch forward."""
    sub, rel, obj, r_idx = edges[:, 4], edges[:, 2], edges[:, 5], edges[:, 0]
    hs = hidden[sub]
    hr = params["rela_embed"][rel]
    h_qr = params["rela_embed"][q_rel][r_idx]
    s = jnp.maximum(hs @ params["Ws_attn"] + hr @ params["Wr_attn"]
                    + h_qr @ params["Wqr_attn"] + params["bqr"], 0.0)
    alpha = jax.nn.sigmoid(s @ params["w_alpha_w"].T + params["w_alpha_b"])
    msg = alpha * (hs + hr)
    agg = jnp.zeros((n_node, hs.shape[1]), jnp.float32).at[obj].add(msg)
    return agg @ params["W_h"]


if __name__ == "__main__":
    in_dim, out_dim, attn_dim, n_rel = 32, 32, 32, 5
    n_node, n_prev, E, B = 32, 32, 128, 2

    key = jax.random.PRNGKey(0)
    ks = jax.random.split(key, 10)

    # deterministic synthetic parameters (linear weights pre-transposed to [in, out])
    params = {
        "rela_embed": jax.random.normal(ks[0], (2 * n_rel + 1, in_dim), jnp.float32) * 0.1,
        "Ws_attn": jax.random.normal(ks[1], (in_dim, attn_dim), jnp.float32) * 0.1,
        "Wr_attn": jax.random.normal(ks[2], (in_dim, attn_dim), jnp.float32) * 0.1,
        "Wqr_attn": jax.random.normal(ks[3], (in_dim, attn_dim), jnp.float32) * 0.1,
        "bqr": jax.random.normal(ks[4], (1, attn_dim), jnp.float32) * 0.1,
        "w_alpha_w": jax.random.normal(ks[5], (1, attn_dim), jnp.float32) * 0.1,
        "w_alpha_b": jax.random.normal(ks[6], (1, 1), jnp.float32) * 0.1,
        "W_h": jax.random.normal(ks[7], (in_dim, out_dim), jnp.float32) * 0.1,
    }

    hidden = jax.random.normal(ks[8], (n_prev, in_dim), jnp.float32)
    q_rel = jnp.array([1, 3], dtype=jnp.int32)                        # [B]

    ek = jax.random.split(ks[9], 4)
    edges = jnp.zeros((E, 6), dtype=jnp.int32)
    edges = edges.at[:, 0].set(jax.random.randint(ek[0], (E,), 0, B))              # r_idx
    edges = edges.at[:, 2].set(jax.random.randint(ek[1], (E,), 0, 2 * n_rel + 1))  # rel
    edges = edges.at[:, 4].set(jax.random.randint(ek[2], (E,), 0, n_prev))         # sub
    edges = edges.at[:, 5].set(jax.random.randint(ek[3], (E,), 0, n_node))         # obj

    out = gnn_layer_pallas(q_rel, hidden, edges, n_node, params)
    out = jax.block_until_ready(out)

    ref = gnn_layer_ref(q_rel, hidden, edges, n_node, params)
    assert out.shape == (n_node, out_dim)
    assert jnp.allclose(out, ref, rtol=1e-4, atol=1e-4), "mismatch vs reference"

    print("KERNEL_OK")
</pallas_src>

<mosaic_0001>
module attributes {stable_mosaic.version = 11 : i64} {
  func.func @gnn_layer_kernel(%arg0: i32, %arg1: i32, %arg2: memref<128x8xi32, #tpu.memory_space<vmem>>, %arg3: memref<1x128xi32, #tpu.memory_space<vmem>>, %arg4: memref<128x256xf32, #tpu.memory_space<vmem>>, %arg5: memref<1x128xf32, #tpu.memory_space<vmem>>, %arg6: memref<1x1xf32, #tpu.memory_space<vmem>>, %arg7: memref<128x128xf32, #tpu.memory_space<vmem>>, %arg8: memref<128x128xf32, #tpu.memory_space<vmem>>, %arg9: memref<128x128xf32, #tpu.memory_space<vmem>>) attributes {dimension_semantics = [#tpu.dimension_semantics<parallel>, #tpu.dimension_semantics<arbitrary>], iteration_bounds = array<i64: 1, 1>, scalar_prefetch = 0 : i64, scratch_operands = 1 : i64, tpu.core_type = #tpu.core_type<tc>, window_params = [{transform_indices = @transform_0, window_bounds = array<i64: 128, 8>}, {transform_indices = @transform_1, window_bounds = array<i64: 1, 128>}, {pipeline_mode = #tpu.pipeline_mode<synchronous>, transform_indices = @transform_2, window_bounds = array<i64: 128, 256>}, {pipeline_mode = #tpu.pipeline_mode<synchronous>, transform_indices = @transform_3, window_bounds = array<i64: 1, 128>}, {pipeline_mode = #tpu.pipeline_mode<synchronous>, transform_indices = @transform_4, window_bounds = array<i64: 1, 1>}, {pipeline_mode = #tpu.pipeline_mode<synchronous>, transform_indices = @transform_5, window_bounds = array<i64: 128, 128>}, {transform_indices = @transform_6, window_bounds = array<i64: 128, 128>}]} {
    %c0_i32 = arith.constant 0 : i32
    %0 = arith.cmpi eq, %arg1, %c0_i32 : i32
    %1 = arith.extui %0 : i1 to i32
    %c0_i32_0 = arith.constant 0 : i32
    %2 = arith.cmpi ne, %1, %c0_i32_0 : i32
    scf.if %2 {
      %cst_22 = arith.constant 0.000000e+00 : f32
      %54 = vector.broadcast %cst_22 : f32 to vector<128x128xf32>
      %c0_23 = arith.constant 0 : index
      %c0_24 = arith.constant 0 : index
      %55 = vector.load %arg9[%c0_23, %c0_24] : memref<128x128xf32, #tpu.memory_space<vmem>>, vector<128x128xf32>
      tpu.vector_store %arg9[%c0_23, %c0_24], %54 {strides = array<i32>} : memref<128x128xf32, #tpu.memory_space<vmem>>, vector<128x128xf32>,
    } else {
    }
    %3 = tpu.iota {dimensions = array<i32: 1>} : vector<128x128xi32>
    %c0 = arith.constant 0 : index
    %c0_1 = arith.constant 0 : index
    %4 = vector.load %arg2[%c0, %c0_1] : memref<128x8xi32, #tpu.memory_space<vmem>>, vector<128x1xi32>
    %5 = vector.broadcast %4 : vector<128x1xi32> to vector<128x128xi32>
    %6 = arith.cmpi eq, %3, %5 : vector<128x128xi32>
    %c0_2 = arith.constant 0 : index
    %c1 = arith.constant 1 : index
    %7 = vector.load %arg2[%c0_2, %c1] : memref<128x8xi32, #tpu.memory_space<vmem>>, vector<128x1xi32>
    %8 = vector.broadcast %7 : vector<128x1xi32> to vector<128x128xi32>
    %9 = arith.cmpi eq, %3, %8 : vector<128x128xi32>
    %10 = arith.ori %6, %9 : vector<128x128xi1>
    %c0_3 = arith.constant 0 : index
    %c2 = arith.constant 2 : index
    %11 = vector.load %arg2[%c0_3, %c2] : memref<128x8xi32, #tpu.memory_space<vmem>>, vector<128x1xi32>
    %12 = vector.broadcast %11 : vector<128x1xi32> to vector<128x128xi32>
    %13 = arith.cmpi eq, %3, %12 : vector<128x128xi32>
    %14 = arith.ori %10, %13 : vector<128x128xi1>
    %15 = arith.extui %14 : vector<128x128xi1> to vector<128x128xi32>
    %16 = arith.sitofp %15 : vector<128x128xi32> to vector<128x128xf32>
    %c0_4 = arith.constant 0 : index
    %c0_5 = arith.constant 0 : index
    %17 = vector.load %arg4[%c0_4, %c0_5] : memref<128x256xf32, #tpu.memory_space<vmem>>, vector<128x256xf32>
    %cst = arith.constant dense<0.000000e+00> : vector<128x256xf32>
    %18 = tpu.matmul %16, %17, %cst {dimension_numbers = #tpu.dot_dimension_numbers<[1], [0], [0], [1], [0, 0, 1, 1], [], []>} : vector<128x128xf32>, vector<128x256xf32>, vector<128x256xf32> -> vector<128x256xf32>
    %19 = vector.extract_strided_slice %18 {offsets = [0, 128], sizes = [128, 128], strides = [1, 1]} : vector<128x256xf32> to vector<128x128xf32>
    %cst_6 = arith.constant 0.000000e+00 : f32
    %20 = vector.broadcast %cst_6 : f32 to vector<128x128xf32>
    %21 = arith.maximumf %19, %20 : vector<128x128xf32>
    %c0_7 = arith.constant 0 : index
    %c0_8 = arith.constant 0 : index
    %22 = vector.load %arg5[%c0_7, %c0_8] : memref<1x128xf32, #tpu.memory_space<vmem>>, vector<1x128xf32>
    %23 = vector.broadcast %22 : vector<1x128xf32> to vector<128x128xf32>
    %24 = arith.mulf %21, %23 : vector<128x128xf32>
    %cst_9 = arith.constant dense<0.000000e+00> : vector<128xf32>
    %25 = vector.multi_reduction <add>, %24, %cst_9 [1] : vector<128x128xf32> to vector<128xf32>
    %26 = vector.shape_cast %25 : vector<128xf32> to vector<128x1xf32>
    %c0_10 = arith.constant 0 : index
    %c0_11 = arith.constant 0 : index
    %27 = vector.load %arg6[%c0_10, %c0_11] : memref<1x1xf32, #tpu.memory_space<vmem>>, vector<1x1xf32>
    %28 = vector.broadcast %27 : vector<1x1xf32> to vector<128x1xf32>
    %29 = arith.addf %26, %28 : vector<128x1xf32>
    %30 = arith.negf %29 : vector<128x1xf32>
    %31 = math.exp %30 : vector<128x1xf32>
    %cst_12 = arith.constant 1.000000e+00 : f32
    %32 = vector.broadcast %cst_12 : f32 to vector<128x1xf32>
    %33 = arith.addf %32, %31 : vector<128x1xf32>
    %34 = arith.divf %32, %33 : vector<128x1xf32>
    %35 = vector.extract_strided_slice %18 {offsets = [0, 0], sizes = [128, 128], strides = [1, 1]} : vector<128x256xf32> to vector<128x128xf32>
    %36 = vector.broadcast %34 : vector<128x1xf32> to vector<128x128xf32>
    %37 = arith.mulf %36, %35 : vector<128x128xf32>
    %c128_i32 = arith.constant 128 : i32
    %38 = arith.muli %arg0, %c128_i32 : i32
    %39 = tpu.iota {dimensions = array<i32: 0>} : vector<128x128xi32>
    %40 = vector.broadcast %38 : i32 to vector<128x128xi32>
    %41 = arith.addi %39, %40 : vector<128x128xi32>
    %c0_13 = arith.constant 0 : index
    %c0_14 = arith.constant 0 : index
    %42 = vector.load %arg3[%c0_13, %c0_14] : memref<1x128xi32, #tpu.memory_space<vmem>>, vector<1x128xi32>
    %43 = vector.broadcast %42 : vector<1x128xi32> to vector<128x128xi32>
    %44 = arith.cmpi eq, %43, %41 : vector<128x128xi32>
    %45 = arith.extui %44 : vector<128x128xi1> to vector<128x128xi32>
    %46 = arith.sitofp %45 : vector<128x128xi32> to vector<128x128xf32>
    %c0_15 = arith.constant 0 : index
    %c0_16 = arith.constant 0 : index
    %47 = vector.load %arg9[%c0_15, %c0_16] : memref<128x128xf32, #tpu.memory_space<vmem>>, vector<128x128xf32>
    %cst_17 = arith.constant dense<0.000000e+00> : vector<128x128xf32>
    %48 = tpu.matmul %46, %37, %cst_17 {dimension_numbers = #tpu.dot_dimension_numbers<[1], [0], [0], [1], [0, 0, 1, 1], [], []>} : vector<128x128xf32>, vector<128x128xf32>, vector<128x128xf32> -> vector<128x128xf32>
    %49 = arith.addf %47, %48 : vector<128x128xf32>
    %c0_18 = arith.constant 0 : index
    %c0_19 = arith.constant 0 : index
    %50 = vector.load %arg9[%c0_18, %c0_19] : memref<128x128xf32, #tpu.memory_space<vmem>>, vector<128x128xf32>
    tpu.vector_store %arg9[%c0_18, %c0_19], %49 {strides = array<i32>} : memref<128x128xf32, #tpu.memory_space<vmem>>, vector<128x128xf32>,
    %c0_i32_20 = arith.constant 0 : i32
    %51 = arith.cmpi eq, %arg1, %c0_i32_20 : i32
    %52 = arith.extui %51 : i1 to i32
    %c0_i32_21 = arith.constant 0 : i32
    %53 = arith.cmpi ne, %52, %c0_i32_21 : i32
    scf.if %53 {
      %c0_22 = arith.constant 0 : index
      %c0_23 = arith.constant 0 : index
      %54 = vector.load %arg9[%c0_22, %c0_23] : memref<128x128xf32, #tpu.memory_space<vmem>>, vector<128x128xf32>
      %c0_24 = arith.constant 0 : index
      %c0_25 = arith.constant 0 : index
      %55 = vector.load %arg7[%c0_24, %c0_25] : memref<128x128xf32, #tpu.memory_space<vmem>>, vector<128x128xf32>
      %cst_26 = arith.constant dense<0.000000e+00> : vector<128x128xf32>
      %56 = tpu.matmul %54, %55, %cst_26 {dimension_numbers = #tpu.dot_dimension_numbers<[1], [0], [0], [1], [0, 0, 1, 1], [], []>} : vector<128x128xf32>, vector<128x128xf32>, vector<128x128xf32> -> vector<128x128xf32>
      %c0_27 = arith.constant 0 : index
      %c0_28 = arith.constant 0 : index
      %57 = vector.load %arg8[%c0_27, %c0_28] : memref<128x128xf32, #tpu.memory_space<vmem>>, vector<128x128xf32>
      tpu.vector_store %arg8[%c0_27, %c0_28], %56 {strides = array<i32>} : memref<128x128xf32, #tpu.memory_space<vmem>>, vector<128x128xf32>,
    } else {
    }
    return
  }
  func.func @transform_0(%arg0: i32, %arg1: i32) -> (i32, i32) {
    %c0_i32 = arith.constant 0 : i32
    %c0_i32_0 = arith.constant 0 : i32
    return %arg1, %c0_i32 : i32, i32
  }
  func.func @transform_1(%arg0: i32, %arg1: i32) -> (i32, i32) {
    %c0_i32 = arith.constant 0 : i32
    %c0_i32_0 = arith.constant 0 : i32
    return %c0_i32, %arg1 : i32, i32
  }
  func.func @transform_2(%arg0: i32, %arg1: i32) -> (i32, i32) {
    %c0_i32 = arith.constant 0 : i32
    %c0_i32_0 = arith.constant 0 : i32
    %c0_i32_1 = arith.constant 0 : i32
    return %c0_i32, %c0_i32_0 : i32, i32
  }
  func.func @transform_3(%arg0: i32, %arg1: i32) -> (i32, i32) {
    %c0_i32 = arith.constant 0 : i32
    %c0_i32_0 = arith.constant 0 : i32
    %c0_i32_1 = arith.constant 0 : i32
    return %c0_i32, %c0_i32_0 : i32, i32
  }
  func.func @transform_4(%arg0: i32, %arg1: i32) -> (i32, i32) {
    %c0_i32 = arith.constant 0 : i32
    %c0_i32_0 = arith.constant 0 : i32
    %c0_i32_1 = arith.constant 0 : i32
    return %c0_i32, %c0_i32_0 : i32, i32
  }
  func.func @transform_5(%arg0: i32, %arg1: i32) -> (i32, i32) {
    %c0_i32 = arith.constant 0 : i32
    %c0_i32_0 = arith.constant 0 : i32
    %c0_i32_1 = arith.constant 0 : i32
    return %c0_i32, %c0_i32_0 : i32, i32
  }
  func.func @transform_6(%arg0: i32, %arg1: i32) -> (i32, i32) {
    %c0_i32 = arith.constant 0 : i32
    %c0_i32_0 = arith.constant 0 : i32
    return %arg0, %c0_i32 : i32, i32
  }
}

module attributes {stable_mosaic.version = 11 : i64} {
  func.func @gnn_layer_kernel(%arg0: i32, %arg1: i32, %arg2: memref<128x8xi32, #tpu.memory_space<vmem>>, %arg3: memref<1x128xi32, #tpu.memory_space<vmem>>, %arg4: memref<128x256xf32, #tpu.memory_space<vmem>>, %arg5: memref<1x128xf32, #tpu.memory_space<vmem>>, %arg6: memref<1x1xf32, #tpu.memory_space<vmem>>, %arg7: memref<128x128xf32, #tpu.memory_space<vmem>>, %arg8: memref<128x128xf32, #tpu.memory_space<vmem>>, %arg9: memref<128x128xf32, #tpu.memory_space<vmem>>) attributes {dimension_semantics = [#tpu.dimension_semantics<parallel>, #tpu.dimension_semantics<arbitrary>], iteration_bounds = array<i64: 1, 1>, scalar_prefetch = 0 : i64, scratch_operands = 1 : i64, tpu.core_type = #tpu.core_type<tc>, window_params = [{transform_indices = @transform_0, window_bounds = array<i64: 128, 8>}, {transform_indices = @transform_1, window_bounds = array<i64: 1, 128>}, {pipeline_mode = #tpu.pipeline_mode<synchronous>, transform_indices = @transform_2, window_bounds = array<i64: 128, 256>}, {pipeline_mode = #tpu.pipeline_mode<synchronous>, transform_indices = @transform_3, window_bounds = array<i64: 1, 128>}, {pipeline_mode = #tpu.pipeline_mode<synchronous>, transform_indices = @transform_4, window_bounds = array<i64: 1, 1>}, {pipeline_mode = #tpu.pipeline_mode<synchronous>, transform_indices = @transform_5, window_bounds = array<i64: 128, 128>}, {transform_indices = @transform_6, window_bounds = array<i64: 128, 128>}]} {
    %c0_i32 = arith.constant 0 : i32
    %0 = arith.cmpi eq, %arg1, %c0_i32 : i32
    %1 = arith.extui %0 : i1 to i32
    %c0_i32_0 = arith.constant 0 : i32
    %2 = arith.cmpi ne, %1, %c0_i32_0 : i32
    scf.if %2 {
      %cst_22 = arith.constant 0.000000e+00 : f32
      %54 = vector.broadcast %cst_22 : f32 to vector<128x128xf32>
      %c0_23 = arith.constant 0 : index
      %c0_24 = arith.constant 0 : index
      %55 = vector.load %arg9[%c0_23, %c0_24] : memref<128x128xf32, #tpu.memory_space<vmem>>, vector<128x128xf32>
      tpu.vector_store %arg9[%c0_23, %c0_24], %54 {strides = array<i32>} : memref<128x128xf32, #tpu.memory_space<vmem>>, vector<128x128xf32>,
    } else {
    }
    %3 = tpu.iota {dimensions = array<i32: 1>} : vector<128x128xi32>
    %c0 = arith.constant 0 : index
    %c0_1 = arith.constant 0 : index
    %4 = vector.load %arg2[%c0, %c0_1] : memref<128x8xi32, #tpu.memory_space<vmem>>, vector<128x1xi32>
    %5 = vector.broadcast %4 : vector<128x1xi32> to vector<128x128xi32>
    %6 = arith.cmpi eq, %3, %5 : vector<128x128xi32>
    %c0_2 = arith.constant 0 : index
    %c1 = arith.constant 1 : index
    %7 = vector.load %arg2[%c0_2, %c1] : memref<128x8xi32, #tpu.memory_space<vmem>>, vector<128x1xi32>
    %8 = vector.broadcast %7 : vector<128x1xi32> to vector<128x128xi32>
    %9 = arith.cmpi eq, %3, %8 : vector<128x128xi32>
    %10 = arith.ori %6, %9 : vector<128x128xi1>
    %c0_3 = arith.constant 0 : index
    %c2 = arith.constant 2 : index
    %11 = vector.load %arg2[%c0_3, %c2] : memref<128x8xi32, #tpu.memory_space<vmem>>, vector<128x1xi32>
    %12 = vector.broadcast %11 : vector<128x1xi32> to vector<128x128xi32>
    %13 = arith.cmpi eq, %3, %12 : vector<128x128xi32>
    %14 = arith.ori %10, %13 : vector<128x128xi1>
    %15 = arith.extui %14 : vector<128x128xi1> to vector<128x128xi32>
    %16 = arith.sitofp %15 : vector<128x128xi32> to vector<128x128xf32>
    %c0_4 = arith.constant 0 : index
    %c0_5 = arith.constant 0 : index
    %17 = vector.load %arg4[%c0_4, %c0_5] : memref<128x256xf32, #tpu.memory_space<vmem>>, vector<128x256xf32>
    %cst = arith.constant dense<0.000000e+00> : vector<128x256xf32>
    %18 = tpu.matmul %16, %17, %cst {dimension_numbers = #tpu.dot_dimension_numbers<[1], [0], [0], [1], [0, 0, 1, 1], [], []>} : vector<128x128xf32>, vector<128x256xf32>, vector<128x256xf32> -> vector<128x256xf32>
    %19 = vector.extract_strided_slice %18 {offsets = [0, 128], sizes = [128, 128], strides = [1, 1]} : vector<128x256xf32> to vector<128x128xf32>
    %cst_6 = arith.constant 0.000000e+00 : f32
    %20 = vector.broadcast %cst_6 : f32 to vector<128x128xf32>
    %21 = arith.maximumf %19, %20 : vector<128x128xf32>
    %c0_7 = arith.constant 0 : index
    %c0_8 = arith.constant 0 : index
    %22 = vector.load %arg5[%c0_7, %c0_8] : memref<1x128xf32, #tpu.memory_space<vmem>>, vector<1x128xf32>
    %23 = vector.broadcast %22 : vector<1x128xf32> to vector<128x128xf32>
    %24 = arith.mulf %21, %23 : vector<128x128xf32>
    %cst_9 = arith.constant dense<0.000000e+00> : vector<128xf32>
    %25 = vector.multi_reduction <add>, %24, %cst_9 [1] : vector<128x128xf32> to vector<128xf32>
    %26 = vector.shape_cast %25 : vector<128xf32> to vector<128x1xf32>
    %c0_10 = arith.constant 0 : index
    %c0_11 = arith.constant 0 : index
    %27 = vector.load %arg6[%c0_10, %c0_11] : memref<1x1xf32, #tpu.memory_space<vmem>>, vector<1x1xf32>
    %28 = vector.broadcast %27 : vector<1x1xf32> to vector<128x1xf32>
    %29 = arith.addf %26, %28 : vector<128x1xf32>
    %30 = arith.negf %29 : vector<128x1xf32>
    %31 = math.exp %30 : vector<128x1xf32>
    %cst_12 = arith.constant 1.000000e+00 : f32
    %32 = vector.broadcast %cst_12 : f32 to vector<128x1xf32>
    %33 = arith.addf %32, %31 : vector<128x1xf32>
    %34 = arith.divf %32, %33 : vector<128x1xf32>
    %35 = vector.extract_strided_slice %18 {offsets = [0, 0], sizes = [128, 128], strides = [1, 1]} : vector<128x256xf32> to vector<128x128xf32>
    %36 = vector.broadcast %34 : vector<128x1xf32> to vector<128x128xf32>
    %37 = arith.mulf %36, %35 : vector<128x128xf32>
    %c128_i32 = arith.constant 128 : i32
    %38 = arith.muli %arg0, %c128_i32 : i32
    %39 = tpu.iota {dimensions = array<i32: 0>} : vector<128x128xi32>
    %40 = vector.broadcast %38 : i32 to vector<128x128xi32>
    %41 = arith.addi %39, %40 : vector<128x128xi32>
    %c0_13 = arith.constant 0 : index
    %c0_14 = arith.constant 0 : index
    %42 = vector.load %arg3[%c0_13, %c0_14] : memref<1x128xi32, #tpu.memory_space<vmem>>, vector<1x128xi32>
    %43 = vector.broadcast %42 : vector<1x128xi32> to vector<128x128xi32>
    %44 = arith.cmpi eq, %43, %41 : vector<128x128xi32>
    %45 = arith.extui %44 : vector<128x128xi1> to vector<128x128xi32>
    %46 = arith.sitofp %45 : vector<128x128xi32> to vector<128x128xf32>
    %c0_15 = arith.constant 0 : index
    %c0_16 = arith.constant 0 : index
    %47 = vector.load %arg9[%c0_15, %c0_16] : memref<128x128xf32, #tpu.memory_space<vmem>>, vector<128x128xf32>
    %cst_17 = arith.constant dense<0.000000e+00> : vector<128x128xf32>
    %48 = tpu.matmul %46, %37, %cst_17 {dimension_numbers = #tpu.dot_dimension_numbers<[1], [0], [0], [1], [0, 0, 1, 1], [], []>} : vector<128x128xf32>, vector<128x128xf32>, vector<128x128xf32> -> vector<128x128xf32>
    %49 = arith.addf %47, %48 : vector<128x128xf32>
    %c0_18 = arith.constant 0 : index
    %c0_19 = arith.constant 0 : index
    %50 = vector.load %arg9[%c0_18, %c0_19] : memref<128x128xf32, #tpu.memory_space<vmem>>, vector<128x128xf32>
    tpu.vector_store %arg9[%c0_18, %c0_19], %49 {strides = array<i32>} : memref<128x128xf32, #tpu.memory_space<vmem>>, vector<128x128xf32>,
    %c0_i32_20 = arith.constant 0 : i32
    %51 = arith.cmpi eq, %arg1, %c0_i32_20 : i32
    %52 = arith.extui %51 : i1 to i32
    %c0_i32_21 = arith.constant 0 : i32
    %53 = arith.cmpi ne, %52, %c0_i32_21 : i32
    scf.if %53 {
      %c0_22 = arith.constant 0 : index
      %c0_23 = arith.constant 0 : index
      %54 = vector.load %arg9[%c0_22, %c0_23] : memref<128x128xf32, #tpu.memory_space<vmem>>, vector<128x128xf32>
      %c0_24 = arith.constant 0 : index
      %c0_25 = arith.constant 0 : index
      %55 = vector.load %arg7[%c0_24, %c0_25] : memref<128x128xf32, #tpu.memory_space<vmem>>, vector<128x128xf32>
      %cst_26 = arith.constant dense<0.000000e+00> : vector<128x128xf32>
      %56 = tpu.matmul %54, %55, %cst_26 {dimension_numbers = #tpu.dot_dimension_numbers<[1], [0], [0], [1], [0, 0, 1, 1], [], []>} : vector<128x128xf32>, vector<128x128xf32>, vector<128x128xf32> -> vector<128x128xf32>
      %c0_27 = arith.constant 0 : index
      %c0_28 = arith.constant 0 : index
      %57 = vector.load %arg8[%c0_27, %c0_28] : memref<128x128xf32, #tpu.memory_space<vmem>>, vector<128x128xf32>
      tpu.vector_store %arg8[%c0_27, %c0_28], %56 {strides = array<i32>} : memref<128x128xf32, #tpu.memory_space<vmem>>, vector<128x128xf32>,
    } else {
    }
    return
  }
  func.func @transform_0(%arg0: i32, %arg1: i32) -> (i32, i32) {
    %c0_i32 = arith.constant 0 : i32
    %c0_i32_0 = arith.constant 0 : i32
    return %arg1, %c0_i32 : i32, i32
  }
  func.func @transform_1(%arg0: i32, %arg1: i32) -> (i32, i32) {
    %c0_i32 = arith.constant 0 : i32
    %c0_i32_0 = arith.constant 0 : i32
    return %c0_i32, %arg1 : i32, i32
  }
  func.func @transform_2(%arg0: i32, %arg1: i32) -> (i32, i32) {
    %c0_i32 = arith.constant 0 : i32
    %c0_i32_0 = arith.constant 0 : i32
    %c0_i32_1 = arith.constant 0 : i32
    return %c0_i32, %c0_i32_0 : i32, i32
  }
  func.func @transform_3(%arg0: i32, %arg1: i32) -> (i32, i32) {
    %c0_i32 = arith.constant 0 : i32
    %c0_i32_0 = arith.constant 0 : i32
    %c0_i32_1 = arith.constant 0 : i32
    return %c0_i32, %c0_i32_0 : i32, i32
  }
  func.func @transform_4(%arg0: i32, %arg1: i32) -> (i32, i32) {
    %c0_i32 = arith.constant 0 : i32
    %c0_i32_0 = arith.constant 0 : i32
    %c0_i32_1 = arith.constant 0 : i32
    return %c0_i32, %c0_i32_0 : i32, i32
  }
  func.func @transform_5(%arg0: i32, %arg1: i32) -> (i32, i32) {
    %c0_i32 = arith.constant 0 : i32
    %c0_i32_0 = arith.constant 0 : i32
    %c0_i32_1 = arith.constant 0 : i32
    return %c0_i32, %c0_i32_0 : i32, i32
  }
  func.func @transform_6(%arg0: i32, %arg1: i32) -> (i32, i32) {
    %c0_i32 = arith.constant 0 : i32
    %c0_i32_0 = arith.constant 0 : i32
    return %arg0, %c0_i32 : i32, i32
  }
}

</mosaic_0001>

<llo_original>
// kernel: tpu_custom_call.1
$region0: #{tpu_custom_call.1}
  #allocation0 [shape = 'u32[]', space=smem, size = 0x4, offset = 0x4, fixed_abs, tag = 'smem constant byte address 0x4 - core index']
  #allocation1 [shape = 'u32[144,128]{1,0:T(1,128)}', space=vmem, size = 0x12000, scoped, tag = 'internal scratch']
  #allocation2 [shape = 'f32[128,128]{1,0:T(8,128)}', space=vmem, size = 0x10000, scoped, tag = 'scratch operand']
  #allocation3 [shape = 'f32[1,1]{1,0:T(1,128)S(1)}', space=vmem, size = 0x200, scoped, tag = 'scoped memory for tpu_custom_call.1']
  %s0 = inlined_call_operand.vmem [shape: s32[128,8], index: 0, kind: input, shape index: {}]
  %s1 = inlined_call_operand.vmem [shape: s32[1,128], index: 1, kind: input, shape index: {}]
  %s2 = inlined_call_operand.hbm [shape: f32[128,256], index: 2, kind: input, shape index: {}]
  %s3 = inlined_call_operand.vmem [shape: f32[1,128], index: 3, kind: input, shape index: {}]
  %s4 = inlined_call_operand.<no memory space> [shape: f32[1,1], index: 4, kind: input, shape index: {}]
  %s5 = inlined_call_operand.vmem [shape: f32[128,128], index: 5, kind: input, shape index: {}]
  %s6 = inlined_call_operand.hbm [shape: f32[128,128], index: 6, kind: output, shape index: {}]
  %s7 = sld [smem:[#allocation0]]
  $region46: #{tpu_custom_call.1} parent=0
    _
  %s9 = ssub.s32 1, %s7
  %s10 = scalar_select 0, %s9, %s7
  %v11 = vstv %s4
  %12 = vst [vmem:[#allocation3] sm:$0x1] %v11
  $region1: #{tpu_custom_call.1} parent=0
    #allocation4 [shape = 'u8[131072]{0}', space=vmem, size = 0x20000, scoped, tag = 'input window, operand 2, single buffered']
    #allocation5 [shape = 's32[1]{0}', space=sflag, size = 0x4, scoped, tag = 'scoped memory for tpu_custom_call.1']
    #allocation6 [shape = 's32[1]{0}', space=sflag, size = 0x4, scoped, tag = 'scoped memory for tpu_custom_call.1']
    #allocation7 [shape = 'u8[65536]{0}', space=vmem, size = 0x10000, scoped, tag = 'output window, operand 0, single buffered']
    %13 = vsyncpa [#allocation5], 0
    %14 = vsyncpa [#allocation6], 0
    // Predicated region
    $region2: #{tpu_custom_call.1} parent=1 // pred_check
      _
    $region3: #{tpu_custom_call.1} parent=1 // pred_check_branch
      %16 = sbr.rel (0) target = $region5
    $region4: #{tpu_custom_call.1} parent=1 // pred_region
      _
    $region5: #{tpu_custom_call.1} parent=1 // pred_fallthru
      _
    // Predicated region
    $region6: #{tpu_custom_call.1} parent=1 // pred_check
      _
    $region7: #{tpu_custom_call.1} parent=1 // pred_check_branch
      %18 = sbr.rel (0) target = $region9
    $region8: #{tpu_custom_call.1} parent=1 // pred_region
      _
    $region9: #{tpu_custom_call.1} parent=1 // pred_fallthru
      _
    // Predicated region
    $region10: #{tpu_custom_call.1} parent=1 // pred_check
      _
    $region11: #{tpu_custom_call.1} parent=1 // pred_check_branch
      %20 = sbr.rel (0) target = $region13
    $region12: #{tpu_custom_call.1} parent=1 // pred_region
      %s22 = ssub.s32 4096, 4096
      %23 = vsyncadd [#allocation5], %s22
      %s24 = sshll.u32 [#allocation4], 4
      %s25 = int_to_ptr.vmem [resolvable:$true] %s24
      %30 = dma.hbm_to_vmem [thread:$0]  %s2, 4096, %s25, [#allocation5], 256, 256, 16
    $region13: #{tpu_custom_call.1} parent=1 // pred_fallthru
      _
    // Predicated region
    $region14: #{tpu_custom_call.1} parent=1 // pred_check
      _
    $region15: #{tpu_custom_call.1} parent=1 // pred_check_branch
      %32 = sbr.rel (0) target = $region17
    $region16: #{tpu_custom_call.1} parent=1 // pred_region
      _
    $region17: #{tpu_custom_call.1} parent=1 // pred_fallthru
      _
    // Predicated region
    $region18: #{tpu_custom_call.1} parent=1 // pred_check
      _
    $region19: #{tpu_custom_call.1} parent=1 // pred_check_branch
      %34 = sbr.rel (0) target = $region21
    $region20: #{tpu_custom_call.1} parent=1 // pred_region
      _
    $region21: #{tpu_custom_call.1} parent=1 // pred_fallthru
      _
    // Predicated region
    $region22: #{tpu_custom_call.1} parent=1 // pred_check
      _
    $region23: #{tpu_custom_call.1} parent=1 // pred_check_branch
      %36 = sbr.rel (0) target = $region25
    $region24: #{tpu_custom_call.1} parent=1 // pred_region
      _
    $region25: #{tpu_custom_call.1} parent=1 // pred_fallthru
      _
    // Predicated region
    $region26: #{tpu_custom_call.1} parent=1 // pred_check
      _
    $region27: #{tpu_custom_call.1} parent=1 // pred_check_branch
      %38 = sbr.rel (0) target = $region29
    $region28: #{tpu_custom_call.1} parent=1 // pred_region
      %39 = dma.done [#allocation5], 4096
    $region29: #{tpu_custom_call.1} parent=1 // pred_fallthru
      _
    %p40 = scmp.eq.s32.totalorder 0, 0
    // Predicated region
    $region30: #{tpu_custom_call.1} parent=1 // pred_check
      %p41 = pneg %p40
    $region31: #{tpu_custom_call.1} parent=1 // pred_check_branch
      %43 = sbr.rel (%p41) target = $region33
    $region32: #{tpu_custom_call.1} parent=1 // pred_region
      %44 = vst [vmem:[#allocation2] sm:$0xff] 0.0
      %45 = vst [vmem:[#allocation2 + $0x8] sm:$0xff] 0.0
      %46 = vst [vmem:[#allocation2 + $0x10] sm:$0xff] 0.0
      %47 = vst [vmem:[#allocation2 + $0x18] sm:$0xff] 0.0
      %48 = vst [vmem:[#allocation2 + $0x20] sm:$0xff] 0.0
      %49 = vst [vmem:[#allocation2 + $0x28] sm:$0xff] 0.0
      %50 = vst [vmem:[#allocation2 + $0x30] sm:$0xff] 0.0
      %51 = vst [vmem:[#allocation2 + $0x38] sm:$0xff] 0.0
      %52 = vst [vmem:[#allocation2 + $0x40] sm:$0xff] 0.0
      %53 = vst [vmem:[#allocation2 + $0x48] sm:$0xff] 0.0
      %54 = vst [vmem:[#allocation2 + $0x50] sm:$0xff] 0.0
      %55 = vst [vmem:[#allocation2 + $0x58] sm:$0xff] 0.0
      %56 = vst [vmem:[#allocation2 + $0x60] sm:$0xff] 0.0
      %57 = vst [vmem:[#allocation2 + $0x68] sm:$0xff] 0.0
      %58 = vst [vmem:[#allocation2 + $0x70] sm:$0xff] 0.0
      %59 = vst [vmem:[#allocation2 + $0x78] sm:$0xff] 0.0
    $region33: #{tpu_custom_call.1} parent=1 // pred_fallthru
      _
    %v60 = vlaneseq
    %v61 = vand.u32 %v60, 127
    %v62 = vld [vmem:[%s0] sm:$0xff]
    %v63 = vld [vmem:[%s0 + $0x8] sm:$0xff]
    %v64 = vld [vmem:[%s0 + $0x10] sm:$0xff]
    %v65 = vld [vmem:[%s0 + $0x18] sm:$0xff]
    %v66 = vld [vmem:[%s0 + $0x20] sm:$0xff]
    %v67 = vld [vmem:[%s0 + $0x28] sm:$0xff]
    %v68 = vld [vmem:[%s0 + $0x30] sm:$0xff]
    %v69 = vld [vmem:[%s0 + $0x38] sm:$0xff]
    %v70 = vld [vmem:[%s0 + $0x40] sm:$0xff]
    %v71 = vld [vmem:[%s0 + $0x48] sm:$0xff]
    %v72 = vld [vmem:[%s0 + $0x50] sm:$0xff]
    %v73 = vld [vmem:[%s0 + $0x58] sm:$0xff]
    %v74 = vld [vmem:[%s0 + $0x60] sm:$0xff]
    %v75 = vld [vmem:[%s0 + $0x68] sm:$0xff]
    %v76 = vld [vmem:[%s0 + $0x70] sm:$0xff]
    %v77 = vld [vmem:[%s0 + $0x78] sm:$0xff]
    %78 = vset.pattern.permute.xlu0 0
    %79 = vperm.xlu0 %78, %v62
    %v80 = vpop.permute.xlu0 %79
    %81 = vset.pattern.permute.xlu0 0
    %82 = vperm.xlu0 %81, %v63
    %v83 = vpop.permute.xlu0 %82
    %84 = vset.pattern.permute.xlu0 0
    %85 = vperm.xlu0 %84, %v64
    %v86 = vpop.permute.xlu0 %85
    %87 = vset.pattern.permute.xlu0 0
    %88 = vperm.xlu0 %87, %v65
    %v89 = vpop.permute.xlu0 %88
    %90 = vset.pattern.permute.xlu0 0
    %91 = vperm.xlu0 %90, %v66
    %v92 = vpop.permute.xlu0 %91
    %93 = vset.pattern.permute.xlu0 0
    %94 = vperm.xlu0 %93, %v67
    %v95 = vpop.permute.xlu0 %94
    %96 = vset.pattern.permute.xlu0 0
    %97 = vperm.xlu0 %96, %v68
    %v98 = vpop.permute.xlu0 %97
    %99 = vset.pattern.permute.xlu0 0
    %100 = vperm.xlu0 %99, %v69
    %v101 = vpop.permute.xlu0 %100
    %102 = vset.pattern.permute.xlu0 0
    %103 = vperm.xlu0 %102, %v70
    %v104 = vpop.permute.xlu0 %103
    %105 = vset.pattern.permute.xlu0 0
    %106 = vperm.xlu0 %105, %v71
    %v107 = vpop.permute.xlu0 %106
    %108 = vset.pattern.permute.xlu0 0
    %109 = vperm.xlu0 %108, %v72
    %v110 = vpop.permute.xlu0 %109
    %111 = vset.pattern.permute.xlu0 0
    %112 = vperm.xlu0 %111, %v73
    %v113 = vpop.permute.xlu0 %112
    %114 = vset.pattern.permute.xlu0 0
    %115 = vperm.xlu0 %114, %v74
    %v116 = vpop.permute.xlu0 %115
    %117 = vset.pattern.permute.xlu0 0
    %118 = vperm.xlu0 %117, %v75
    %v119 = vpop.permute.xlu0 %118
    %120 = vset.pattern.permute.xlu0 0
    %121 = vperm.xlu0 %120, %v76
    %v122 = vpop.permute.xlu0 %121
    %123 = vset.pattern.permute.xlu0 0
    %124 = vperm.xlu0 %123, %v77
    %v125 = vpop.permute.xlu0 %124
    %vm126 = vcmp.eq.s32.totalorder %v61, %v80
    %vm127 = vcmp.eq.s32.totalorder %v61, %v83
    %vm128 = vcmp.eq.s32.totalorder %v61, %v86
    %vm129 = vcmp.eq.s32.totalorder %v61, %v89
    %vm130 = vcmp.eq.s32.totalorder %v61, %v92
    %vm131 = vcmp.eq.s32.totalorder %v61, %v95
    %vm132 = vcmp.eq.s32.totalorder %v61, %v98
    %vm133 = vcmp.eq.s32.totalorder %v61, %v101
    %vm134 = vcmp.eq.s32.totalorder %v61, %v104
    %vm135 = vcmp.eq.s32.totalorder %v61, %v107
    %vm136 = vcmp.eq.s32.totalorder %v61, %v110
    %vm137 = vcmp.eq.s32.totalorder %v61, %v113
    %vm138 = vcmp.eq.s32.totalorder %v61, %v116
    %vm139 = vcmp.eq.s32.totalorder %v61, %v119
    %vm140 = vcmp.eq.s32.totalorder %v61, %v122
    %vm141 = vcmp.eq.s32.totalorder %v61, %v125
    %142 = vset.pattern.permute.xlu0 1
    %143 = vperm.xlu0 %142, %v62
    %v144 = vpop.permute.xlu0 %143
    %145 = vset.pattern.permute.xlu0 1
    %146 = vperm.xlu0 %145, %v63
    %v147 = vpop.permute.xlu0 %146
    %148 = vset.pattern.permute.xlu0 1
    %149 = vperm.xlu0 %148, %v64
    %v150 = vpop.permute.xlu0 %149
    %151 = vset.pattern.permute.xlu0 1
    %152 = vperm.xlu0 %151, %v65
    %v153 = vpop.permute.xlu0 %152
    %154 = vset.pattern.permute.xlu0 1
    %155 = vperm.xlu0 %154, %v66
    %v156 = vpop.permute.xlu0 %155
    %157 = vset.pattern.permute.xlu0 1
    %158 = vperm.xlu0 %157, %v67
    %v159 = vpop.permute.xlu0 %158
    %160 = vset.pattern.permute.xlu0 1
    %161 = vperm.xlu0 %160, %v68
    %v162 = vpop.permute.xlu0 %161
    %163 = vset.pattern.permute.xlu0 1
    %164 = vperm.xlu0 %163, %v69
    %v165 = vpop.permute.xlu0 %164
    %166 = vset.pattern.permute.xlu0 1
    %167 = vperm.xlu0 %166, %v70
    %v168 = vpop.permute.xlu0 %167
    %169 = vset.pattern.permute.xlu0 1
    %170 = vperm.xlu0 %169, %v71
    %v171 = vpop.permute.xlu0 %170
    %172 = vset.pattern.permute.xlu0 1
    %173 = vperm.xlu0 %172, %v72
    %v174 = vpop.permute.xlu0 %173
    %175 = vset.pattern.permute.xlu0 1
    %176 = vperm.xlu0 %175, %v73
    %v177 = vpop.permute.xlu0 %176
    %178 = vset.pattern.permute.xlu0 1
    %179 = vperm.xlu0 %178, %v74
    %v180 = vpop.permute.xlu0 %179
    %181 = vset.pattern.permute.xlu0 1
    %182 = vperm.xlu0 %181, %v75
    %v183 = vpop.permute.xlu0 %182
    %184 = vset.pattern.permute.xlu0 1
    %185 = vperm.xlu0 %184, %v76
    %v186 = vpop.permute.xlu0 %185
    %187 = vset.pattern.permute.xlu0 1
    %188 = vperm.xlu0 %187, %v77
    %v189 = vpop.permute.xlu0 %188
    %vm190 = vcmp.eq.s32.totalorder %v61, %v144
    %vm191 = vcmp.eq.s32.totalorder %v61, %v147
    %vm192 = vcmp.eq.s32.totalorder %v61, %v150
    %vm193 = vcmp.eq.s32.totalorder %v61, %v153
    %vm194 = vcmp.eq.s32.totalorder %v61, %v156
    %vm195 = vcmp.eq.s32.totalorder %v61, %v159
    %vm196 = vcmp.eq.s32.totalorder %v61, %v162
    %vm197 = vcmp.eq.s32.totalorder %v61, %v165
    %vm198 = vcmp.eq.s32.totalorder %v61, %v168
    %vm199 = vcmp.eq.s32.totalorder %v61, %v171
    %vm200 = vcmp.eq.s32.totalorder %v61, %v174
    %vm201 = vcmp.eq.s32.totalorder %v61, %v177
    %vm202 = vcmp.eq.s32.totalorder %v61, %v180
    %vm203 = vcmp.eq.s32.totalorder %v61, %v183
    %vm204 = vcmp.eq.s32.totalorder %v61, %v186
    %vm205 = vcmp.eq.s32.totalorder %v61, %v189
    %vm206 = vmor %vm126, %vm190
    %vm207 = vmor %vm127, %vm191
    %vm208 = vmor %vm128, %vm192
    %vm209 = vmor %vm129, %vm193
    %vm210 = vmor %vm130, %vm194
    %vm211 = vmor %vm131, %vm195
    %vm212 = vmor %vm132, %vm196
    %vm213 = vmor %vm133, %vm197
    %vm214 = vmor %vm134, %vm198
    %vm215 = vmor %vm135, %vm199
    %vm216 = vmor %vm136, %vm200
    %vm217 = vmor %vm137, %vm201
    %vm218 = vmor %vm138, %vm202
    %vm219 = vmor %vm139, %vm203
    %vm220 = vmor %vm140, %vm204
    %vm221 = vmor %vm141, %vm205
    %222 = vset.pattern.permute.xlu0 2
    %223 = vperm.xlu0 %222, %v62
    %v224 = vpop.permute.xlu0 %223
    %225 = vset.pattern.permute.xlu0 2
    %226 = vperm.xlu0 %225, %v63
    %v227 = vpop.permute.xlu0 %226
    %228 = vset.pattern.permute.xlu0 2
    %229 = vperm.xlu0 %228, %v64
    %v230 = vpop.permute.xlu0 %229
    %231 = vset.pattern.permute.xlu0 2
    %232 = vperm.xlu0 %231, %v65
    %v233 = vpop.permute.xlu0 %232
    %234 = vset.pattern.permute.xlu0 2
    %235 = vperm.xlu0 %234, %v66
    %v236 = vpop.permute.xlu0 %235
    %237 = vset.pattern.permute.xlu0 2
    %238 = vperm.xlu0 %237, %v67
    %v239 = vpop.permute.xlu0 %238
    %240 = vset.pattern.permute.xlu0 2
    %241 = vperm.xlu0 %240, %v68
    %v242 = vpop.permute.xlu0 %241
    %243 = vset.pattern.permute.xlu0 2
    %244 = vperm.xlu0 %243, %v69
    %v245 = vpop.permute.xlu0 %244
    %246 = vset.pattern.permute.xlu0 2
    %247 = vperm.xlu0 %246, %v70
    %v248 = vpop.permute.xlu0 %247
    %249 = vset.pattern.permute.xlu0 2
    %250 = vperm.xlu0 %249, %v71
    %v251 = vpop.permute.xlu0 %250
    %252 = vset.pattern.permute.xlu0 2
    %253 = vperm.xlu0 %252, %v72
    %v254 = vpop.permute.xlu0 %253
    %255 = vset.pattern.permute.xlu0 2
    %256 = vperm.xlu0 %255, %v73
    %v257 = vpop.permute.xlu0 %256
    %258 = vset.pattern.permute.xlu0 2
    %259 = vperm.xlu0 %258, %v74
    %v260 = vpop.permute.xlu0 %259
    %261 = vset.pattern.permute.xlu0 2
    %262 = vperm.xlu0 %261, %v75
    %v263 = vpop.permute.xlu0 %262
    %264 = vset.pattern.permute.xlu0 2
    %265 = vperm.xlu0 %264, %v76
    %v266 = vpop.permute.xlu0 %265
    %267 = vset.pattern.permute.xlu0 2
    %268 = vperm.xlu0 %267, %v77
    %v269 = vpop.permute.xlu0 %268
    %vm270 = vcmp.eq.s32.totalorder %v61, %v224
    %vm271 = vcmp.eq.s32.totalorder %v61, %v227
    %vm272 = vcmp.eq.s32.totalorder %v61, %v230
    %vm273 = vcmp.eq.s32.totalorder %v61, %v233
    %vm274 = vcmp.eq.s32.totalorder %v61, %v236
    %vm275 = vcmp.eq.s32.totalorder %v61, %v239
    %vm276 = vcmp.eq.s32.totalorder %v61, %v242
    %vm277 = vcmp.eq.s32.totalorder %v61, %v245
    %vm278 = vcmp.eq.s32.totalorder %v61, %v248
    %vm279 = vcmp.eq.s32.totalorder %v61, %v251
    %vm280 = vcmp.eq.s32.totalorder %v61, %v254
    %vm281 = vcmp.eq.s32.totalorder %v61, %v257
    %vm282 = vcmp.eq.s32.totalorder %v61, %v260
    %vm283 = vcmp.eq.s32.totalorder %v61, %v263
    %vm284 = vcmp.eq.s32.totalorder %v61, %v266
    %vm285 = vcmp.eq.s32.totalorder %v61, %v269
    %vm286 = vmor %vm206, %vm270
    %vm287 = vmor %vm207, %vm271
    %vm288 = vmor %vm208, %vm272
    %vm289 = vmor %vm209, %vm273
    %vm290 = vmor %vm210, %vm274
    %vm291 = vmor %vm211, %vm275
    %vm292 = vmor %vm212, %vm276
    %vm293 = vmor %vm213, %vm277
    %vm294 = vmor %vm214, %vm278
    %vm295 = vmor %vm215, %vm279
    %vm296 = vmor %vm216, %vm280
    %vm297 = vmor %vm217, %vm281
    %vm298 = vmor %vm218, %vm282
    %vm299 = vmor %vm219, %vm283
    %vm300 = vmor %vm220, %vm284
    %vm301 = vmor %vm221, %vm285
    %v302 = vsel %vm286, 1, 0
    %v303 = vsel %vm287, 1, 0
    %v304 = vsel %vm288, 1, 0
    %v305 = vsel %vm289, 1, 0
    %v306 = vsel %vm290, 1, 0
    %v307 = vsel %vm291, 1, 0
    %v308 = vsel %vm292, 1, 0
    %v309 = vsel %vm293, 1, 0
    %v310 = vsel %vm294, 1, 0
    %v311 = vsel %vm295, 1, 0
    %v312 = vsel %vm296, 1, 0
    %v313 = vsel %vm297, 1, 0
    %v314 = vsel %vm298, 1, 0
    %v315 = vsel %vm299, 1, 0
    %v316 = vsel %vm300, 1, 0
    %v317 = vsel %vm301, 1, 0
    %v318 = vcvt.s32.f32 %v302
    %v319 = vcvt.s32.f32 %v303
    %v320 = vcvt.s32.f32 %v304
    %v321 = vcvt.s32.f32 %v305
    %v322 = vcvt.s32.f32 %v306
    %v323 = vcvt.s32.f32 %v307
    %v324 = vcvt.s32.f32 %v308
    %v325 = vcvt.s32.f32 %v309
    %v326 = vcvt.s32.f32 %v310
    %v327 = vcvt.s32.f32 %v311
    %v328 = vcvt.s32.f32 %v312
    %v329 = vcvt.s32.f32 %v313
    %v330 = vcvt.s32.f32 %v314
    %v331 = vcvt.s32.f32 %v315
    %v332 = vcvt.s32.f32 %v316
    %v333 = vcvt.s32.f32 %v317
    %v334 = vld [vmem:[#allocation4] sm:$0xff]
    %v335 = vld [vmem:[#allocation4 + $0x8] sm:$0xff]
    %v336 = vld [vmem:[#allocation4 + $0x10] sm:$0xff]
    %v337 = vld [vmem:[#allocation4 + $0x18] sm:$0xff]
    %v338 = vld [vmem:[#allocation4 + $0x20] sm:$0xff]
    %v339 = vld [vmem:[#allocation4 + $0x28] sm:$0xff]
    %v340 = vld [vmem:[#allocation4 + $0x30] sm:$0xff]
    %v341 = vld [vmem:[#allocation4 + $0x38] sm:$0xff]
    %v342 = vld [vmem:[#allocation4 + $0x40] sm:$0xff]
    %v343 = vld [vmem:[#allocation4 + $0x48] sm:$0xff]
    %v344 = vld [vmem:[#allocation4 + $0x50] sm:$0xff]
    %v345 = vld [vmem:[#allocation4 + $0x58] sm:$0xff]
    %v346 = vld [vmem:[#allocation4 + $0x60] sm:$0xff]
    %v347 = vld [vmem:[#allocation4 + $0x68] sm:$0xff]
    %v348 = vld [vmem:[#allocation4 + $0x70] sm:$0xff]
    %v349 = vld [vmem:[#allocation4 + $0x78] sm:$0xff]
    %v350 = vld [vmem:[#allocation4 + $0x80] sm:$0xff]
    %v351 = vld [vmem:[#allocation4 + $0x88] sm:$0xff]
    %v352 = vld [vmem:[#allocation4 + $0x90] sm:$0xff]
    %v353 = vld [vmem:[#allocation4 + $0x98] sm:$0xff]
    %v354 = vld [vmem:[#allocation4 + $0xa0] sm:$0xff]
    %v355 = vld [vmem:[#allocation4 + $0xa8] sm:$0xff]
    %v356 = vld [vmem:[#allocation4 + $0xb0] sm:$0xff]
    %v357 = vld [vmem:[#allocation4 + $0xb8] sm:$0xff]
    %v358 = vld [vmem:[#allocation4 + $0xc0] sm:$0xff]
    %v359 = vld [vmem:[#allocation4 + $0xc8] sm:$0xff]
    %v360 = vld [vmem:[#allocation4 + $0xd0] sm:$0xff]
    %v361 = vld [vmem:[#allocation4 + $0xd8] sm:$0xff]
    %v362 = vld [vmem:[#allocation4 + $0xe0] sm:$0xff]
    %v363 = vld [vmem:[#allocation4 + $0xe8] sm:$0xff]
    %v364 = vld [vmem:[#allocation4 + $0xf0] sm:$0xff]
    %v365 = vld [vmem:[#allocation4 + $0xf8] sm:$0xff]
    %366 = vmatprep.subr.mxu0 %v335
    %367 = vmatpush1.msra.mxu0 %v334
    %368 = vmatprep.subr.mxu0 %v337
    %369 = vmatpush1.msra.mxu0 %v336
    %370 = vmatprep.subr.mxu0 %v339
    %371 = vmatpush1.msra.mxu0 %v338
    %372 = vmatprep.subr.mxu0 %v341
    %373 = vmatpush1.msra.mxu0 %v340
    %374 = vmatprep.subr.mxu0 %v343
    %375 = vmatpush1.msra.mxu0 %v342
    %376 = vmatprep.subr.mxu0 %v345
    %377 = vmatpush1.msra.mxu0 %v344
    %378 = vmatprep.subr.mxu0 %v347
    %379 = vmatpush1.msra.mxu0 %v346
    %380 = vmatprep.subr.mxu0 %v349
    %381 = vmatpush1.msra.mxu0 %v348
    %382 = vmatprep.subr.mxu0 %v351
    %383 = vmatpush1.msra.mxu0 %v350
    %384 = vmatprep.subr.mxu0 %v353
    %385 = vmatpush1.msra.mxu0 %v352
    %386 = vmatprep.subr.mxu0 %v355
    %387 = vmatpush1.msra.mxu0 %v354
    %388 = vmatprep.subr.mxu0 %v357
    %389 = vmatpush1.msra.mxu0 %v356
    %390 = vmatprep.subr.mxu0 %v359
    %391 = vmatpush1.msra.mxu0 %v358
    %392 = vmatprep.subr.mxu0 %v361
    %393 = vmatpush1.msra.mxu0 %v360
    %394 = vmatprep.subr.mxu0 %v363
    %395 = vmatpush1.msra.mxu0 %v362
    %396 = vmatprep.subr.mxu0 %v365
    %397 = vmatpush1.msra.mxu0 %v364
    %398 = vmatprep.subr.mxu0 0.0
    %399 = vmatpush1.msra.mxu0 0.0
    %400 = vmatprep.subr.mxu0 0.0
    %401 = vmatpush1.msra.mxu0 0.0
    %402 = vmatprep.subr.mxu0 0.0
    %403 = vmatpush1.msra.mxu0 0.0
    %404 = vmatprep.subr.mxu0 0.0
    %405 = vmatpush1.msra.mxu0 0.0
    %406 = vmatprep.subr.mxu0 0.0
    %407 = vmatpush1.msra.mxu0 0.0
    %408 = vmatprep.subr.mxu0 0.0
    %409 = vmatpush1.msra.mxu0 0.0
    %410 = vmatprep.subr.mxu0 0.0
    %411 = vmatpush1.msra.mxu0 0.0
    %412 = vmatprep.subr.mxu0 0.0
    %413 = vmatpush1.msra.mxu0 0.0
    %414 = vmatprep.subr.mxu0 0.0
    %415 = vmatpush1.msra.mxu0 0.0
    %416 = vmatprep.subr.mxu0 0.0
    %417 = vmatpush1.msra.mxu0 0.0
    %418 = vmatprep.subr.mxu0 0.0
    %419 = vmatpush1.msra.mxu0 0.0
    %420 = vmatprep.subr.mxu0 0.0
    %421 = vmatpush1.msra.mxu0 0.0
    %422 = vmatprep.subr.mxu0 0.0
    %423 = vmatpush1.msra.mxu0 0.0
    %424 = vmatprep.subr.mxu0 0.0
    %425 = vmatpush1.msra.mxu0 0.0
    %426 = vmatprep.subr.mxu0 0.0
    %427 = vmatpush1.msra.mxu0 0.0
    %428 = vmatprep.subr.mxu0 0.0
    %429 = vmatpush1.msra.mxu0 0.0
    %430 = vmatprep.mubr.f32.mxu0 0.0
    %431 = vmatmul.mubr.f32.gmra.mrb[0].mxu0 %v318
    %v432 = vpop.f32.mrb[0].mxu0
    %v433 = vadd.f32 0.0, %v432
    %v434 = vpop.f32.mrb[0].mxu0
    %v435 = vadd.f32 0.0, %v434
    %436 = vmatprep.mubr.f32.mxu0 0.0
    %437 = vmatmul.mubr.f32.gmra.mrb[0].mxu0 %v319
    %v438 = vpop.f32.mrb[0].mxu0
    %v439 = vadd.f32 0.0, %v438
    %v440 = vpop.f32.mrb[0].mxu0
    %v441 = vadd.f32 0.0, %v440
    %442 = vmatprep.mubr.f32.mxu0 0.0
    %443 = vmatmul.mubr.f32.gmra.mrb[0].mxu0 %v320
    %v444 = vpop.f32.mrb[0].mxu0
    %v445 = vadd.f32 0.0, %v444
    %v446 = vpop.f32.mrb[0].mxu0
    %v447 = vadd.f32 0.0, %v446
    %448 = vmatprep.mubr.f32.mxu0 0.0
    %449 = vmatmul.mubr.f32.gmra.mrb[0].mxu0 %v321
    %v450 = vpop.f32.mrb[0].mxu0
    %v451 = vadd.f32 0.0, %v450
    %v452 = vpop.f32.mrb[0].mxu0
    %v453 = vadd.f32 0.0, %v452
    %454 = vmatprep.mubr.f32.mxu0 0.0
    %455 = vmatmul.mubr.f32.gmra.mrb[0].mxu0 %v322
    %v456 = vpop.f32.mrb[0].mxu0
    %v457 = vadd.f32 0.0, %v456
    %v458 = vpop.f32.mrb[0].mxu0
    %v459 = vadd.f32 0.0, %v458
    %460 = vmatprep.mubr.f32.mxu0 0.0
    %461 = vmatmul.mubr.f32.gmra.mrb[0].mxu0 %v323
    %v462 = vpop.f32.mrb[0].mxu0
    %v463 = vadd.f32 0.0, %v462
    %v464 = vpop.f32.mrb[0].mxu0
    %v465 = vadd.f32 0.0, %v464
    %466 = vmatprep.mubr.f32.mxu0 0.0
    %467 = vmatmul.mubr.f32.gmra.mrb[0].mxu0 %v324
    %v468 = vpop.f32.mrb[0].mxu0
    %v469 = vadd.f32 0.0, %v468
    %v470 = vpop.f32.mrb[0].mxu0
    %v471 = vadd.f32 0.0, %v470
    %472 = vmatprep.mubr.f32.mxu0 0.0
    %473 = vmatmul.mubr.f32.gmra.mrb[0].mxu0 %v325
    %v474 = vpop.f32.mrb[0].mxu0
    %v475 = vadd.f32 0.0, %v474
    %v476 = vpop.f32.mrb[0].mxu0
    %v477 = vadd.f32 0.0, %v476
    %478 = vmatprep.mubr.f32.mxu0 0.0
    %479 = vmatmul.mubr.f32.gmra.mrb[0].mxu0 %v326
    %v480 = vpop.f32.mrb[0].mxu0
    %v481 = vadd.f32 0.0, %v480
    %v482 = vpop.f32.mrb[0].mxu0
    %v483 = vadd.f32 0.0, %v482
    %484 = vmatprep.mubr.f32.mxu0 0.0
    %485 = vmatmul.mubr.f32.gmra.mrb[0].mxu0 %v327
    %v486 = vpop.f32.mrb[0].mxu0
    %v487 = vadd.f32 0.0, %v486
    %v488 = vpop.f32.mrb[0].mxu0
    %v489 = vadd.f32 0.0, %v488
    %490 = vmatprep.mubr.f32.mxu0 0.0
    %491 = vmatmul.mubr.f32.gmra.mrb[0].mxu0 %v328
    %v492 = vpop.f32.mrb[0].mxu0
    %v493 = vadd.f32 0.0, %v492
    %v494 = vpop.f32.mrb[0].mxu0
    %v495 = vadd.f32 0.0, %v494
    %496 = vmatprep.mubr.f32.mxu0 0.0
    %497 = vmatmul.mubr.f32.gmra.mrb[0].mxu0 %v329
    %v498 = vpop.f32.mrb[0].mxu0
    %v499 = vadd.f32 0.0, %v498
    %v500 = vpop.f32.mrb[0].mxu0
    %v501 = vadd.f32 0.0, %v500
    %502 = vmatprep.mubr.f32.mxu0 0.0
    %503 = vmatmul.mubr.f32.gmra.mrb[0].mxu0 %v330
    %v504 = vpop.f32.mrb[0].mxu0
    %v505 = vadd.f32 0.0, %v504
    %v506 = vpop.f32.mrb[0].mxu0
    %v507 = vadd.f32 0.0, %v506
    %508 = vmatprep.mubr.f32.mxu0 0.0
    %509 = vmatmul.mubr.f32.gmra.mrb[0].mxu0 %v331
    %v510 = vpop.f32.mrb[0].mxu0
    %v511 = vadd.f32 0.0, %v510
    %v512 = vpop.f32.mrb[0].mxu0
    %v513 = vadd.f32 0.0, %v512
    %514 = vmatprep.mubr.f32.mxu0 0.0
    %515 = vmatmul.mubr.f32.gmra.mrb[0].mxu0 %v332
    %v516 = vpop.f32.mrb[0].mxu0
    %v517 = vadd.f32 0.0, %v516
    %v518 = vpop.f32.mrb[0].mxu0
    %v519 = vadd.f32 0.0, %v518
    %520 = vmatprep.mubr.f32.mxu0 0.0
    %521 = vmatmul.mubr.f32.gmra.mrb[0].mxu0 %v333
    %v522 = vpop.f32.mrb[0].mxu0
    %v523 = vadd.f32 0.0, %v522
    %v524 = vpop.f32.mrb[0].mxu0
    %v525 = vadd.f32 0.0, %v524
    %526 = vdwg.mxu0
    %v527 = vmax.f32 %v435, 0.0
    %v528 = vmax.f32 %v441, 0.0
    %v529 = vmax.f32 %v447, 0.0
    %v530 = vmax.f32 %v453, 0.0
    %v531 = vmax.f32 %v459, 0.0
    %v532 = vmax.f32 %v465, 0.0
    %v533 = vmax.f32 %v471, 0.0
    %v534 = vmax.f32 %v477, 0.0
    %v535 = vmax.f32 %v483, 0.0
    %v536 = vmax.f32 %v489, 0.0
    %v537 = vmax.f32 %v495, 0.0
    %v538 = vmax.f32 %v501, 0.0
    %v539 = vmax.f32 %v507, 0.0
    %v540 = vmax.f32 %v513, 0.0
    %v541 = vmax.f32 %v519, 0.0
    %v542 = vmax.f32 %v525, 0.0
    %v543 = vld [vmem:[%s3] sm:$0x1]
    %v545 = vlaneseq
    %v546 = vshrl.u32 %v545, 7
    %v547 = vsub.s32 0, %v546
    %v548 = vrot.slane %v543, %v547
    %v550 = vmul.f32 %v527, %v548
    %v551 = vmul.f32 %v528, %v548
    %v552 = vmul.f32 %v529, %v548
    %v553 = vmul.f32 %v530, %v548
    %v554 = vmul.f32 %v531, %v548
    %v555 = vmul.f32 %v532, %v548
    %v556 = vmul.f32 %v533, %v548
    %v557 = vmul.f32 %v534, %v548
    %v558 = vmul.f32 %v535, %v548
    %v559 = vmul.f32 %v536, %v548
    %v560 = vmul.f32 %v537, %v548
    %v561 = vmul.f32 %v538, %v548
    %v562 = vmul.f32 %v539, %v548
    %v563 = vmul.f32 %v540, %v548
    %v564 = vmul.f32 %v541, %v548
    %v565 = vmul.f32 %v542, %v548
    %566 = vadd.xlane.f32.xlu0 %v550
    %v567 = vpop.xlane.xlu0 %566
    %568 = vadd.xlane.f32.xlu0 %v551
    %v569 = vpop.xlane.xlu0 %568
    %570 = vadd.xlane.f32.xlu0 %v552
    %v571 = vpop.xlane.xlu0 %570
    %572 = vadd.xlane.f32.xlu0 %v553
    %v573 = vpop.xlane.xlu0 %572
    %574 = vadd.xlane.f32.xlu0 %v554
    %v575 = vpop.xlane.xlu0 %574
    %576 = vadd.xlane.f32.xlu0 %v555
    %v577 = vpop.xlane.xlu0 %576
    %578 = vadd.xlane.f32.xlu0 %v556
    %v579 = vpop.xlane.xlu0 %578
    %580 = vadd.xlane.f32.xlu0 %v557
    %v581 = vpop.xlane.xlu0 %580
    %582 = vadd.xlane.f32.xlu0 %v558
    %v583 = vpop.xlane.xlu0 %582
    %584 = vadd.xlane.f32.xlu0 %v559
    %v585 = vpop.xlane.xlu0 %584
    %586 = vadd.xlane.f32.xlu0 %v560
    %v587 = vpop.xlane.xlu0 %586
    %588 = vadd.xlane.f32.xlu0 %v561
    %v589 = vpop.xlane.xlu0 %588
    %590 = vadd.xlane.f32.xlu0 %v562
    %v591 = vpop.xlane.xlu0 %590
    %592 = vadd.xlane.f32.xlu0 %v563
    %v593 = vpop.xlane.xlu0 %592
    %594 = vadd.xlane.f32.xlu0 %v564
    %v595 = vpop.xlane.xlu0 %594
    %596 = vadd.xlane.f32.xlu0 %v565
    %v597 = vpop.xlane.xlu0 %596
    %v598 = vld [vmem:[#allocation3] sm:$0x1]
    %v600 = vlaneseq
    %v601 = vshrl.u32 %v600, 7
    %v602 = vsub.s32 0, %v601
    %v603 = vrot.slane %v598, %v602
    %v605 = vadd.f32 %v567, %v603
    %v606 = vadd.f32 %v569, %v603
    %v607 = vadd.f32 %v571, %v603
    %v608 = vadd.f32 %v573, %v603
    %v609 = vadd.f32 %v575, %v603
    %v610 = vadd.f32 %v577, %v603
    %v611 = vadd.f32 %v579, %v603
    %v612 = vadd.f32 %v581, %v603
    %v613 = vadd.f32 %v583, %v603
    %v614 = vadd.f32 %v585, %v603
    %v615 = vadd.f32 %v587, %v603
    %v616 = vadd.f32 %v589, %v603
    %v617 = vadd.f32 %v591, %v603
    %v618 = vadd.f32 %v593, %v603
    %v619 = vadd.f32 %v595, %v603
    %v620 = vadd.f32 %v597, %v603
    %v621 = vxor.u32 %v605, 2147483648
    %v622 = vxor.u32 %v606, 2147483648
    %v623 = vxor.u32 %v607, 2147483648
    %v624 = vxor.u32 %v608, 2147483648
    %v625 = vxor.u32 %v609, 2147483648
    %v626 = vxor.u32 %v610, 2147483648
    %v627 = vxor.u32 %v611, 2147483648
    %v628 = vxor.u32 %v612, 2147483648
    %v629 = vxor.u32 %v613, 2147483648
    %v630 = vxor.u32 %v614, 2147483648
    %v631 = vxor.u32 %v615, 2147483648
    %v632 = vxor.u32 %v616, 2147483648
    %v633 = vxor.u32 %v617, 2147483648
    %v634 = vxor.u32 %v618, 2147483648
    %v635 = vxor.u32 %v619, 2147483648
    %v636 = vxor.u32 %v620, 2147483648
    %v637 = vmul.f32 %v621, 1.442695
    %v638 = vpow.pop %v637
    %v639 = vmul.f32 %v622, 1.442695
    %v640 = vpow.pop %v639
    %v641 = vmul.f32 %v623, 1.442695
    %v642 = vpow.pop %v641
    %v643 = vmul.f32 %v624, 1.442695
    %v644 = vpow.pop %v643
    %v645 = vmul.f32 %v625, 1.442695
    %v646 = vpow.pop %v645
    %v647 = vmul.f32 %v626, 1.442695
    %v648 = vpow.pop %v647
    %v649 = vmul.f32 %v627, 1.442695
    %v650 = vpow.pop %v649
    %v651 = vmul.f32 %v628, 1.442695
    %v652 = vpow.pop %v651
    %v653 = vmul.f32 %v629, 1.442695
    %v654 = vpow.pop %v653
    %v655 = vmul.f32 %v630, 1.442695
    %v656 = vpow.pop %v655
    %v657 = vmul.f32 %v631, 1.442695
    %v658 = vpow.pop %v657
    %v659 = vmul.f32 %v632, 1.442695
    %v660 = vpow.pop %v659
    %v661 = vmul.f32 %v633, 1.442695
    %v662 = vpow.pop %v661
    %v663 = vmul.f32 %v634, 1.442695
    %v664 = vpow.pop %v663
    %v665 = vmul.f32 %v635, 1.442695
    %v666 = vpow.pop %v665
    %v667 = vmul.f32 %v636, 1.442695
    %v668 = vpow.pop %v667
    %v669 = vadd.f32 %v638, 1.0
    %v670 = vadd.f32 %v640, 1.0
    %v671 = vadd.f32 %v642, 1.0
    %v672 = vadd.f32 %v644, 1.0
    %v673 = vadd.f32 %v646, 1.0
    %v674 = vadd.f32 %v648, 1.0
    %v675 = vadd.f32 %v650, 1.0
    %v676 = vadd.f32 %v652, 1.0
    %v677 = vadd.f32 %v654, 1.0
    %v678 = vadd.f32 %v656, 1.0
    %v679 = vadd.f32 %v658, 1.0
    %v680 = vadd.f32 %v660, 1.0
    %v681 = vadd.f32 %v662, 1.0
    %v682 = vadd.f32 %v664, 1.0
    %v683 = vadd.f32 %v666, 1.0
    %v684 = vadd.f32 %v668, 1.0
    %v685 = vrcp.pop %v669
    %v686 = vmul.f32 1.0, %v685
    %v687 = vrcp.pop %v670
    %v688 = vmul.f32 1.0, %v687
    %v689 = vrcp.pop %v671
    %v690 = vmul.f32 1.0, %v689
    %v691 = vrcp.pop %v672
    %v692 = vmul.f32 1.0, %v691
    %v693 = vrcp.pop %v673
    %v694 = vmul.f32 1.0, %v693
    %v695 = vrcp.pop %v674
    %v696 = vmul.f32 1.0, %v695
    %v697 = vrcp.pop %v675
    %v698 = vmul.f32 1.0, %v697
    %v699 = vrcp.pop %v676
    %v700 = vmul.f32 1.0, %v699
    %v701 = vrcp.pop %v677
    %v702 = vmul.f32 1.0, %v701
    %v703 = vrcp.pop %v678
    %v704 = vmul.f32 1.0, %v703
    %v705 = vrcp.pop %v679
    %v706 = vmul.f32 1.0, %v705
    %v707 = vrcp.pop %v680
    %v708 = vmul.f32 1.0, %v707
    %v709 = vrcp.pop %v681
    %v710 = vmul.f32 1.0, %v709
    %v711 = vrcp.pop %v682
    %v712 = vmul.f32 1.0, %v711
    %v713 = vrcp.pop %v683
    %v714 = vmul.f32 1.0, %v713
    %v715 = vrcp.pop %v684
    %v716 = vmul.f32 1.0, %v715
    %718 = vset.pattern.permute.xlu0 0
    %719 = vperm.xlu0 %718, %v686
    %v720 = vpop.permute.xlu0 %719
    %723 = vset.pattern.permute.xlu0 0
    %724 = vperm.xlu0 %723, %v688
    %v725 = vpop.permute.xlu0 %724
    %728 = vset.pattern.permute.xlu0 0
    %729 = vperm.xlu0 %728, %v690
    %v730 = vpop.permute.xlu0 %729
    %733 = vset.pattern.permute.xlu0 0
    %734 = vperm.xlu0 %733, %v692
    %v735 = vpop.permute.xlu0 %734
    %738 = vset.pattern.permute.xlu0 0
    %739 = vperm.xlu0 %738, %v694
    %v740 = vpop.permute.xlu0 %739
    %743 = vset.pattern.permute.xlu0 0
    %744 = vperm.xlu0 %743, %v696
    %v745 = vpop.permute.xlu0 %744
    %748 = vset.pattern.permute.xlu0 0
    %749 = vperm.xlu0 %748, %v698
    %v750 = vpop.permute.xlu0 %749
    %753 = vset.pattern.permute.xlu0 0
    %754 = vperm.xlu0 %753, %v700
    %v755 = vpop.permute.xlu0 %754
    %758 = vset.pattern.permute.xlu0 0
    %759 = vperm.xlu0 %758, %v702
    %v760 = vpop.permute.xlu0 %759
    %763 = vset.pattern.permute.xlu0 0
    %764 = vperm.xlu0 %763, %v704
    %v765 = vpop.permute.xlu0 %764
    %768 = vset.pattern.permute.xlu0 0
    %769 = vperm.xlu0 %768, %v706
    %v770 = vpop.permute.xlu0 %769
    %773 = vset.pattern.permute.xlu0 0
    %774 = vperm.xlu0 %773, %v708
    %v775 = vpop.permute.xlu0 %774
    %778 = vset.pattern.permute.xlu0 0
    %779 = vperm.xlu0 %778, %v710
    %v780 = vpop.permute.xlu0 %779
    %783 = vset.pattern.permute.xlu0 0
    %784 = vperm.xlu0 %783, %v712
    %v785 = vpop.permute.xlu0 %784
    %788 = vset.pattern.permute.xlu0 0
    %789 = vperm.xlu0 %788, %v714
    %v790 = vpop.permute.xlu0 %789
    %793 = vset.pattern.permute.xlu0 0
    %794 = vperm.xlu0 %793, %v716
    %v795 = vpop.permute.xlu0 %794
    %v797 = vmul.f32 %v720, %v433
    %v798 = vmul.f32 %v725, %v439
    %v799 = vmul.f32 %v730, %v445
    %v800 = vmul.f32 %v735, %v451
    %v801 = vmul.f32 %v740, %v457
    %v802 = vmul.f32 %v745, %v463
    %v803 = vmul.f32 %v750, %v469
    %v804 = vmul.f32 %v755, %v475
    %v805 = vmul.f32 %v760, %v481
    %v806 = vmul.f32 %v765, %v487
    %v807 = vmul.f32 %v770, %v493
    %v808 = vmul.f32 %v775, %v499
    %v809 = vmul.f32 %v780, %v505
    %v810 = vmul.f32 %v785, %v511
    %v811 = vmul.f32 %v790, %v517
    %v812 = vmul.f32 %v795, %v523
    %s813 = smul.u32 0, 128
    %v814 = vlaneseq
    %v815 = vshrl.u32 %v814, 7
    %v816 = vadd.s32 %v815, 8
    %v817 = vadd.s32 %v815, 16
    %v818 = vadd.s32 %v815, 24
    %v819 = vadd.s32 %v815, 32
    %v820 = vadd.s32 %v815, 40
    %v821 = vadd.s32 %v815, 48
    %v822 = vadd.s32 %v815, 56
    %v823 = vadd.s32 %v815, 64
    %v824 = vadd.s32 %v815, 72
    %v825 = vadd.s32 %v815, 80
    %v826 = vadd.s32 %v815, 88
    %v827 = vadd.s32 %v815, 96
    %v828 = vadd.s32 %v815, 104
    %v829 = vadd.s32 %v815, 112
    %v830 = vadd.s32 %v815, 120
    %v831 = vstv %s813
    %v832 = vadd.s32 %v815, %v831
    %v833 = vadd.s32 %v816, %v831
    %v834 = vadd.s32 %v817, %v831
    %v835 = vadd.s32 %v818, %v831
    %v836 = vadd.s32 %v819, %v831
    %v837 = vadd.s32 %v820, %v831
    %v838 = vadd.s32 %v821, %v831
    %v839 = vadd.s32 %v822, %v831
    %v840 = vadd.s32 %v823, %v831
    %v841 = vadd.s32 %v824, %v831
    %v842 = vadd.s32 %v825, %v831
    %v843 = vadd.s32 %v826, %v831
    %v844 = vadd.s32 %v827, %v831
    %v845 = vadd.s32 %v828, %v831
    %v846 = vadd.s32 %v829, %v831
    %v847 = vadd.s32 %v830, %v831
    %v848 = vld [vmem:[%s1] sm:$0x1]
    %v849 = vlaneseq
    %v850 = vshrl.u32 %v849, 7
    %v851 = vsub.s32 0, %v850
    %v852 = vrot.slane %v848, %v851
    %vm853 = vcmp.eq.s32.totalorder %v852, %v832
    %vm854 = vcmp.eq.s32.totalorder %v852, %v833
    %vm855 = vcmp.eq.s32.totalorder %v852, %v834
    %vm856 = vcmp.eq.s32.totalorder %v852, %v835
    %vm857 = vcmp.eq.s32.totalorder %v852, %v836
    %vm858 = vcmp.eq.s32.totalorder %v852, %v837
    %vm859 = vcmp.eq.s32.totalorder %v852, %v838
    %vm860 = vcmp.eq.s32.totalorder %v852, %v839
    %vm861 = vcmp.eq.s32.totalorder %v852, %v840
    %vm862 = vcmp.eq.s32.totalorder %v852, %v841
    %vm863 = vcmp.eq.s32.totalorder %v852, %v842
    %vm864 = vcmp.eq.s32.totalorder %v852, %v843
    %vm865 = vcmp.eq.s32.totalorder %v852, %v844
    %vm866 = vcmp.eq.s32.totalorder %v852, %v845
    %vm867 = vcmp.eq.s32.totalorder %v852, %v846
    %vm868 = vcmp.eq.s32.totalorder %v852, %v847
    %v869 = vsel %vm853, 1, 0
    %v870 = vsel %vm854, 1, 0
    %v871 = vsel %vm855, 1, 0
    %v872 = vsel %vm856, 1, 0
    %v873 = vsel %vm857, 1, 0
    %v874 = vsel %vm858, 1, 0
    %v875 = vsel %vm859, 1, 0
    %v876 = vsel %vm860, 1, 0
    %v877 = vsel %vm861, 1, 0
    %v878 = vsel %vm862, 1, 0
    %v879 = vsel %vm863, 1, 0
    %v880 = vsel %vm864, 1, 0
    %v881 = vsel %vm865, 1, 0
    %v882 = vsel %vm866, 1, 0
    %v883 = vsel %vm867, 1, 0
    %v884 = vsel %vm868, 1, 0
    %v885 = vcvt.s32.f32 %v869
    %v886 = vcvt.s32.f32 %v870
    %v887 = vcvt.s32.f32 %v871
    %v888 = vcvt.s32.f32 %v872
    %v889 = vcvt.s32.f32 %v873
    %v890 = vcvt.s32.f32 %v874
    %v891 = vcvt.s32.f32 %v875
    %v892 = vcvt.s32.f32 %v876
    %v893 = vcvt.s32.f32 %v877
    %v894 = vcvt.s32.f32 %v878
    %v895 = vcvt.s32.f32 %v879
    %v896 = vcvt.s32.f32 %v880
    %v897 = vcvt.s32.f32 %v881
    %v898 = vcvt.s32.f32 %v882
    %v899 = vcvt.s32.f32 %v883
    %v900 = vcvt.s32.f32 %v884
    %v901 = vld [vmem:[#allocation2] sm:$0xff]
    %v902 = vld [vmem:[#allocation2 + $0x8] sm:$0xff]
    %v903 = vld [vmem:[#allocation2 + $0x10] sm:$0xff]
    %v904 = vld [vmem:[#allocation2 + $0x18] sm:$0xff]
    %v905 = vld [vmem:[#allocation2 + $0x20] sm:$0xff]
    %v906 = vld [vmem:[#allocation2 + $0x28] sm:$0xff]
    %v907 = vld [vmem:[#allocation2 + $0x30] sm:$0xff]
    %v908 = vld [vmem:[#allocation2 + $0x38] sm:$0xff]
    %v909 = vld [vmem:[#allocation2 + $0x40] sm:$0xff]
    %v910 = vld [vmem:[#allocation2 + $0x48] sm:$0xff]
    %v911 = vld [vmem:[#allocation2 + $0x50] sm:$0xff]
    %v912 = vld [vmem:[#allocation2 + $0x58] sm:$0xff]
    %v913 = vld [vmem:[#allocation2 + $0x60] sm:$0xff]
    %v914 = vld [vmem:[#allocation2 + $0x68] sm:$0xff]
    %v915 = vld [vmem:[#allocation2 + $0x70] sm:$0xff]
    %v916 = vld [vmem:[#allocation2 + $0x78] sm:$0xff]
    %917 = vmatprep.subr.mxu0 0.0
    %918 = vmatpush1.msra.mxu0 %v797
    %919 = vmatprep.subr.mxu0 0.0
    %920 = vmatpush1.msra.mxu0 %v798
    %921 = vmatprep.subr.mxu0 0.0
    %922 = vmatpush1.msra.mxu0 %v799
    %923 = vmatprep.subr.mxu0 0.0
    %924 = vmatpush1.msra.mxu0 %v800
    %925 = vmatprep.subr.mxu0 0.0
    %926 = vmatpush1.msra.mxu0 %v801
    %927 = vmatprep.subr.mxu0 0.0
    %928 = vmatpush1.msra.mxu0 %v802
    %929 = vmatprep.subr.mxu0 0.0
    %930 = vmatpush1.msra.mxu0 %v803
    %931 = vmatprep.subr.mxu0 0.0
    %932 = vmatpush1.msra.mxu0 %v804
    %933 = vmatprep.subr.mxu0 0.0
    %934 = vmatpush1.msra.mxu0 %v805
    %935 = vmatprep.subr.mxu0 0.0
    %936 = vmatpush1.msra.mxu0 %v806
    %937 = vmatprep.subr.mxu0 0.0
    %938 = vmatpush1.msra.mxu0 %v807
    %939 = vmatprep.subr.mxu0 0.0
    %940 = vmatpush1.msra.mxu0 %v808
    %941 = vmatprep.subr.mxu0 0.0
    %942 = vmatpush1.msra.mxu0 %v809
    %943 = vmatprep.subr.mxu0 0.0
    %944 = vmatpush1.msra.mxu0 %v810
    %945 = vmatprep.subr.mxu0 0.0
    %946 = vmatpush1.msra.mxu0 %v811
    %947 = vmatprep.subr.mxu0 0.0
    %948 = vmatpush1.msra.mxu0 %v812
    %949 = vmatprep.subr.mxu0 0.0
    %950 = vmatpush1.msra.mxu0 0.0
    %951 = vmatprep.subr.mxu0 0.0
    %952 = vmatpush1.msra.mxu0 0.0
    %953 = vmatprep.subr.mxu0 0.0
    %954 = vmatpush1.msra.mxu0 0.0
    %955 = vmatprep.subr.mxu0 0.0
    %956 = vmatpush1.msra.mxu0 0.0
    %957 = vmatprep.subr.mxu0 0.0
    %958 = vmatpush1.msra.mxu0 0.0
    %959 = vmatprep.subr.mxu0 0.0
    %960 = vmatpush1.msra.mxu0 0.0
    %961 = vmatprep.subr.mxu0 0.0
    %962 = vmatpush1.msra.mxu0 0.0
    %963 = vmatprep.subr.mxu0 0.0
    %964 = vmatpush1.msra.mxu0 0.0
    %965 = vmatprep.subr.mxu0 0.0
    %966 = vmatpush1.msra.mxu0 0.0
    %967 = vmatprep.subr.mxu0 0.0
    %968 = vmatpush1.msra.mxu0 0.0
    %969 = vmatprep.subr.mxu0 0.0
    %970 = vmatpush1.msra.mxu0 0.0
    %971 = vmatprep.subr.mxu0 0.0
    %972 = vmatpush1.msra.mxu0 0.0
    %973 = vmatprep.subr.mxu0 0.0
    %974 = vmatpush1.msra.mxu0 0.0
    %975 = vmatprep.subr.mxu0 0.0
    %976 = vmatpush1.msra.mxu0 0.0
    %977 = vmatprep.subr.mxu0 0.0
    %978 = vmatpush1.msra.mxu0 0.0
    %979 = vmatprep.subr.mxu0 0.0
    %980 = vmatpush1.msra.mxu0 0.0
    %981 = vmatprep.mubr.f32.mxu0 0.0
    %982 = vmatmul.mubr.f32.gmra.mrb[0].mxu0 %v885
    %v983 = vpop.f32.mrb[0].mxu0
    %v984 = vadd.f32 0.0, %v983
    %v985 = vpop.f32.mrb[0].mxu0
    %986 = vmatprep.mubr.f32.mxu0 0.0
    %987 = vmatmul.mubr.f32.gmra.mrb[0].mxu0 %v886
    %v988 = vpop.f32.mrb[0].mxu0
    %v989 = vadd.f32 0.0, %v988
    %v990 = vpop.f32.mrb[0].mxu0
    %991 = vmatprep.mubr.f32.mxu0 0.0
    %992 = vmatmul.mubr.f32.gmra.mrb[0].mxu0 %v887
    %v993 = vpop.f32.mrb[0].mxu0
    %v994 = vadd.f32 0.0, %v993
    %v995 = vpop.f32.mrb[0].mxu0
    %996 = vmatprep.mubr.f32.mxu0 0.0
    %997 = vmatmul.mubr.f32.gmra.mrb[0].mxu0 %v888
    %v998 = vpop.f32.mrb[0].mxu0
    %v999 = vadd.f32 0.0, %v998
    %v1000 = vpop.f32.mrb[0].mxu0
    %1001 = vmatprep.mubr.f32.mxu0 0.0
    %1002 = vmatmul.mubr.f32.gmra.mrb[0].mxu0 %v889
    %v1003 = vpop.f32.mrb[0].mxu0
    %v1004 = vadd.f32 0.0, %v1003
    %v1005 = vpop.f32.mrb[0].mxu0
    %1006 = vmatprep.mubr.f32.mxu0 0.0
    %1007 = vmatmul.mubr.f32.gmra.mrb[0].mxu0 %v890
    %v1008 = vpop.f32.mrb[0].mxu0
    %v1009 = vadd.f32 0.0, %v1008
    %v1010 = vpop.f32.mrb[0].mxu0
    %1011 = vmatprep.mubr.f32.mxu0 0.0
    %1012 = vmatmul.mubr.f32.gmra.mrb[0].mxu0 %v891
    %v1013 = vpop.f32.mrb[0].mxu0
    %v1014 = vadd.f32 0.0, %v1013
    %v1015 = vpop.f32.mrb[0].mxu0
    %1016 = vmatprep.mubr.f32.mxu0 0.0
    %1017 = vmatmul.mubr.f32.gmra.mrb[0].mxu0 %v892
    %v1018 = vpop.f32.mrb[0].mxu0
    %v1019 = vadd.f32 0.0, %v1018
    %v1020 = vpop.f32.mrb[0].mxu0
    %1021 = vmatprep.mubr.f32.mxu0 0.0
    %1022 = vmatmul.mubr.f32.gmra.mrb[0].mxu0 %v893
    %v1023 = vpop.f32.mrb[0].mxu0
    %v1024 = vadd.f32 0.0, %v1023
    %v1025 = vpop.f32.mrb[0].mxu0
    %1026 = vmatprep.mubr.f32.mxu0 0.0
    %1027 = vmatmul.mubr.f32.gmra.mrb[0].mxu0 %v894
    %v1028 = vpop.f32.mrb[0].mxu0
    %v1029 = vadd.f32 0.0, %v1028
    %v1030 = vpop.f32.mrb[0].mxu0
    %1031 = vmatprep.mubr.f32.mxu0 0.0
    %1032 = vmatmul.mubr.f32.gmra.mrb[0].mxu0 %v895
    %v1033 = vpop.f32.mrb[0].mxu0
    %v1034 = vadd.f32 0.0, %v1033
    %v1035 = vpop.f32.mrb[0].mxu0
    %1036 = vmatprep.mubr.f32.mxu0 0.0
    %1037 = vmatmul.mubr.f32.gmra.mrb[0].mxu0 %v896
    %v1038 = vpop.f32.mrb[0].mxu0
    %v1039 = vadd.f32 0.0, %v1038
    %v1040 = vpop.f32.mrb[0].mxu0
    %1041 = vmatprep.mubr.f32.mxu0 0.0
    %1042 = vmatmul.mubr.f32.gmra.mrb[0].mxu0 %v897
    %v1043 = vpop.f32.mrb[0].mxu0
    %v1044 = vadd.f32 0.0, %v1043
    %v1045 = vpop.f32.mrb[0].mxu0
    %1046 = vmatprep.mubr.f32.mxu0 0.0
    %1047 = vmatmul.mubr.f32.gmra.mrb[0].mxu0 %v898
    %v1048 = vpop.f32.mrb[0].mxu0
    %v1049 = vadd.f32 0.0, %v1048
    %v1050 = vpop.f32.mrb[0].mxu0
    %1051 = vmatprep.mubr.f32.mxu0 0.0
    %1052 = vmatmul.mubr.f32.gmra.mrb[0].mxu0 %v899
    %v1053 = vpop.f32.mrb[0].mxu0
    %v1054 = vadd.f32 0.0, %v1053
    %v1055 = vpop.f32.mrb[0].mxu0
    %1056 = vmatprep.mubr.f32.mxu0 0.0
    %1057 = vmatmul.mubr.f32.gmra.mrb[0].mxu0 %v900
    %v1058 = vpop.f32.mrb[0].mxu0
    %v1059 = vadd.f32 0.0, %v1058
    %v1060 = vpop.f32.mrb[0].mxu0
    %1061 = vdwg.mxu0
    %v1062 = vadd.f32 %v901, %v984
    %v1063 = vadd.f32 %v902, %v989
    %v1064 = vadd.f32 %v903, %v994
    %v1065 = vadd.f32 %v904, %v999
    %v1066 = vadd.f32 %v905, %v1004
    %v1067 = vadd.f32 %v906, %v1009
    %v1068 = vadd.f32 %v907, %v1014
    %v1069 = vadd.f32 %v908, %v1019
    %v1070 = vadd.f32 %v909, %v1024
    %v1071 = vadd.f32 %v910, %v1029
    %v1072 = vadd.f32 %v911, %v1034
    %v1073 = vadd.f32 %v912, %v1039
    %v1074 = vadd.f32 %v913, %v1044
    %v1075 = vadd.f32 %v914, %v1049
    %v1076 = vadd.f32 %v915, %v1054
    %v1077 = vadd.f32 %v916, %v1059
    %1078 = vst [vmem:[#allocation2] sm:$0xff] %v1062
    %1079 = vst [vmem:[#allocation2 + $0x8] sm:$0xff] %v1063
    %1080 = vst [vmem:[#allocation2 + $0x10] sm:$0xff] %v1064
    %1081 = vst [vmem:[#allocation2 + $0x18] sm:$0xff] %v1065
    %1082 = vst [vmem:[#allocation2 + $0x20] sm:$0xff] %v1066
    %1083 = vst [vmem:[#allocation2 + $0x28] sm:$0xff] %v1067
    %1084 = vst [vmem:[#allocation2 + $0x30] sm:$0xff] %v1068
    %1085 = vst [vmem:[#allocation2 + $0x38] sm:$0xff] %v1069
    %1086 = vst [vmem:[#allocation2 + $0x40] sm:$0xff] %v1070
    %1087 = vst [vmem:[#allocation2 + $0x48] sm:$0xff] %v1071
    %1088 = vst [vmem:[#allocation2 + $0x50] sm:$0xff] %v1072
    %1089 = vst [vmem:[#allocation2 + $0x58] sm:$0xff] %v1073
    %1090 = vst [vmem:[#allocation2 + $0x60] sm:$0xff] %v1074
    %1091 = vst [vmem:[#allocation2 + $0x68] sm:$0xff] %v1075
    %1092 = vst [vmem:[#allocation2 + $0x70] sm:$0xff] %v1076
    %1093 = vst [vmem:[#allocation2 + $0x78] sm:$0xff] %v1077
    // Predicated region
    $region34: #{tpu_custom_call.1} parent=1 // pred_check
      %p1094 = pneg %p40
    $region35: #{tpu_custom_call.1} parent=1 // pred_check_branch
      %1096 = sbr.rel (%p1094) target = $region37
    $region36: #{tpu_custom_call.1} parent=1 // pred_region
      %v1097 = vld [vmem:[#allocation2] sm:$0xff]
      %v1098 = vld [vmem:[#allocation2 + $0x8] sm:$0xff]
      %v1099 = vld [vmem:[#allocation2 + $0x10] sm:$0xff]
      %v1100 = vld [vmem:[#allocation2 + $0x18] sm:$0xff]
      %v1101 = vld [vmem:[#allocation2 + $0x20] sm:$0xff]
      %v1102 = vld [vmem:[#allocation2 + $0x28] sm:$0xff]
      %v1103 = vld [vmem:[#allocation2 + $0x30] sm:$0xff]
      %v1104 = vld [vmem:[#allocation2 + $0x38] sm:$0xff]
      %v1105 = vld [vmem:[#allocation2 + $0x40] sm:$0xff]
      %v1106 = vld [vmem:[#allocation2 + $0x48] sm:$0xff]
      %v1107 = vld [vmem:[#allocation2 + $0x50] sm:$0xff]
      %v1108 = vld [vmem:[#allocation2 + $0x58] sm:$0xff]
      %v1109 = vld [vmem:[#allocation2 + $0x60] sm:$0xff]
      %v1110 = vld [vmem:[#allocation2 + $0x68] sm:$0xff]
      %v1111 = vld [vmem:[#allocation2 + $0x70] sm:$0xff]
      %v1112 = vld [vmem:[#allocation2 + $0x78] sm:$0xff]
      %v1113 = vld [vmem:[%s5] sm:$0xff]
      %v1114 = vld [vmem:[%s5 + $0x8] sm:$0xff]
      %v1115 = vld [vmem:[%s5 + $0x10] sm:$0xff]
      %v1116 = vld [vmem:[%s5 + $0x18] sm:$0xff]
      %v1117 = vld [vmem:[%s5 + $0x20] sm:$0xff]
      %v1118 = vld [vmem:[%s5 + $0x28] sm:$0xff]
      %v1119 = vld [vmem:[%s5 + $0x30] sm:$0xff]
      %v1120 = vld [vmem:[%s5 + $0x38] sm:$0xff]
      %v1121 = vld [vmem:[%s5 + $0x40] sm:$0xff]
      %v1122 = vld [vmem:[%s5 + $0x48] sm:$0xff]
      %v1123 = vld [vmem:[%s5 + $0x50] sm:$0xff]
      %v1124 = vld [vmem:[%s5 + $0x58] sm:$0xff]
      %v1125 = vld [vmem:[%s5 + $0x60] sm:$0xff]
      %v1126 = vld [vmem:[%s5 + $0x68] sm:$0xff]
      %v1127 = vld [vmem:[%s5 + $0x70] sm:$0xff]
      %v1128 = vld [vmem:[%s5 + $0x78] sm:$0xff]
      %1129 = vmatprep.subr.mxu0 0.0
      %1130 = vmatpush1.msra.mxu0 %v1113
      %1131 = vmatprep.subr.mxu0 0.0
      %1132 = vmatpush1.msra.mxu0 %v1114
      %1133 = vmatprep.subr.mxu0 0.0
      %1134 = vmatpush1.msra.mxu0 %v1115
      %1135 = vmatprep.subr.mxu0 0.0
      %1136 = vmatpush1.msra.mxu0 %v1116
      %1137 = vmatprep.subr.mxu0 0.0
      %1138 = vmatpush1.msra.mxu0 %v1117
      %1139 = vmatprep.subr.mxu0 0.0
      %1140 = vmatpush1.msra.mxu0 %v1118
      %1141 = vmatprep.subr.mxu0 0.0
      %1142 = vmatpush1.msra.mxu0 %v1119
      %1143 = vmatprep.subr.mxu0 0.0
      %1144 = vmatpush1.msra.mxu0 %v1120
      %1145 = vmatprep.subr.mxu0 0.0
      %1146 = vmatpush1.msra.mxu0 %v1121
      %1147 = vmatprep.subr.mxu0 0.0
      %1148 = vmatpush1.msra.mxu0 %v1122
      %1149 = vmatprep.subr.mxu0 0.0
      %1150 = vmatpush1.msra.mxu0 %v1123
      %1151 = vmatprep.subr.mxu0 0.0
      %1152 = vmatpush1.msra.mxu0 %v1124
      %1153 = vmatprep.subr.mxu0 0.0
      %1154 = vmatpush1.msra.mxu0 %v1125
      %1155 = vmatprep.subr.mxu0 0.0
      %1156 = vmatpush1.msra.mxu0 %v1126
      %1157 = vmatprep.subr.mxu0 0.0
      %1158 = vmatpush1.msra.mxu0 %v1127
      %1159 = vmatprep.subr.mxu0 0.0
      %1160 = vmatpush1.msra.mxu0 %v1128
      %1161 = vmatprep.subr.mxu0 0.0
      %1162 = vmatpush1.msra.mxu0 0.0
      %1163 = vmatprep.subr.mxu0 0.0
      %1164 = vmatpush1.msra.mxu0 0.0
      %1165 = vmatprep.subr.mxu0 0.0
      %1166 = vmatpush1.msra.mxu0 0.0
      %1167 = vmatprep.subr.mxu0 0.0
      %1168 = vmatpush1.msra.mxu0 0.0
      %1169 = vmatprep.subr.mxu0 0.0
      %1170 = vmatpush1.msra.mxu0 0.0
      %1171 = vmatprep.subr.mxu0 0.0
      %1172 = vmatpush1.msra.mxu0 0.0
      %1173 = vmatprep.subr.mxu0 0.0
      %1174 = vmatpush1.msra.mxu0 0.0
      %1175 = vmatprep.subr.mxu0 0.0
      %1176 = vmatpush1.msra.mxu0 0.0
      %1177 = vmatprep.subr.mxu0 0.0
      %1178 = vmatpush1.msra.mxu0 0.0
      %1179 = vmatprep.subr.mxu0 0.0
      %1180 = vmatpush1.msra.mxu0 0.0
      %1181 = vmatprep.subr.mxu0 0.0
      %1182 = vmatpush1.msra.mxu0 0.0
      %1183 = vmatprep.subr.mxu0 0.0
      %1184 = vmatpush1.msra.mxu0 0.0
      %1185 = vmatprep.subr.mxu0 0.0
      %1186 = vmatpush1.msra.mxu0 0.0
      %1187 = vmatprep.subr.mxu0 0.0
      %1188 = vmatpush1.msra.mxu0 0.0
      %1189 = vmatprep.subr.mxu0 0.0
      %1190 = vmatpush1.msra.mxu0 0.0
      %1191 = vmatprep.subr.mxu0 0.0
      %1192 = vmatpush1.msra.mxu0 0.0
      %1193 = vmatprep.mubr.f32.mxu0 0.0
      %1194 = vmatmul.mubr.f32.gmra.mrb[0].mxu0 %v1097
      %v1195 = vpop.f32.mrb[0].mxu0
      %v1196 = vadd.f32 0.0, %v1195
      %v1197 = vpop.f32.mrb[0].mxu0
      %1198 = vmatprep.mubr.f32.mxu0 0.0
      %1199 = vmatmul.mubr.f32.gmra.mrb[0].mxu0 %v1098
      %v1200 = vpop.f32.mrb[0].mxu0
      %v1201 = vadd.f32 0.0, %v1200
      %v1202 = vpop.f32.mrb[0].mxu0
      %1203 = vmatprep.mubr.f32.mxu0 0.0
      %1204 = vmatmul.mubr.f32.gmra.mrb[0].mxu0 %v1099
      %v1205 = vpop.f32.mrb[0].mxu0
      %v1206 = vadd.f32 0.0, %v1205
      %v1207 = vpop.f32.mrb[0].mxu0
      %1208 = vmatprep.mubr.f32.mxu0 0.0
      %1209 = vmatmul.mubr.f32.gmra.mrb[0].mxu0 %v1100
      %v1210 = vpop.f32.mrb[0].mxu0
      %v1211 = vadd.f32 0.0, %v1210
      %v1212 = vpop.f32.mrb[0].mxu0
      %1213 = vmatprep.mubr.f32.mxu0 0.0
      %1214 = vmatmul.mubr.f32.gmra.mrb[0].mxu0 %v1101
      %v1215 = vpop.f32.mrb[0].mxu0
      %v1216 = vadd.f32 0.0, %v1215
      %v1217 = vpop.f32.mrb[0].mxu0
      %1218 = vmatprep.mubr.f32.mxu0 0.0
      %1219 = vmatmul.mubr.f32.gmra.mrb[0].mxu0 %v1102
      %v1220 = vpop.f32.mrb[0].mxu0
      %v1221 = vadd.f32 0.0, %v1220
      %v1222 = vpop.f32.mrb[0].mxu0
      %1223 = vmatprep.mubr.f32.mxu0 0.0
      %1224 = vmatmul.mubr.f32.gmra.mrb[0].mxu0 %v1103
      %v1225 = vpop.f32.mrb[0].mxu0
      %v1226 = vadd.f32 0.0, %v1225
      %v1227 = vpop.f32.mrb[0].mxu0
      %1228 = vmatprep.mubr.f32.mxu0 0.0
      %1229 = vmatmul.mubr.f32.gmra.mrb[0].mxu0 %v1104
      %v1230 = vpop.f32.mrb[0].mxu0
      %v1231 = vadd.f32 0.0, %v1230
      %v1232 = vpop.f32.mrb[0].mxu0
      %1233 = vmatprep.mubr.f32.mxu0 0.0
      %1234 = vmatmul.mubr.f32.gmra.mrb[0].mxu0 %v1105
      %v1235 = vpop.f32.mrb[0].mxu0
      %v1236 = vadd.f32 0.0, %v1235
      %v1237 = vpop.f32.mrb[0].mxu0
      %1238 = vmatprep.mubr.f32.mxu0 0.0
      %1239 = vmatmul.mubr.f32.gmra.mrb[0].mxu0 %v1106
      %v1240 = vpop.f32.mrb[0].mxu0
      %v1241 = vadd.f32 0.0, %v1240
      %v1242 = vpop.f32.mrb[0].mxu0
      %1243 = vmatprep.mubr.f32.mxu0 0.0
      %1244 = vmatmul.mubr.f32.gmra.mrb[0].mxu0 %v1107
      %v1245 = vpop.f32.mrb[0].mxu0
      %v1246 = vadd.f32 0.0, %v1245
      %v1247 = vpop.f32.mrb[0].mxu0
      %1248 = vmatprep.mubr.f32.mxu0 0.0
      %1249 = vmatmul.mubr.f32.gmra.mrb[0].mxu0 %v1108
      %v1250 = vpop.f32.mrb[0].mxu0
      %v1251 = vadd.f32 0.0, %v1250
      %v1252 = vpop.f32.mrb[0].mxu0
      %1253 = vmatprep.mubr.f32.mxu0 0.0
      %1254 = vmatmul.mubr.f32.gmra.mrb[0].mxu0 %v1109
      %v1255 = vpop.f32.mrb[0].mxu0
      %v1256 = vadd.f32 0.0, %v1255
      %v1257 = vpop.f32.mrb[0].mxu0
      %1258 = vmatprep.mubr.f32.mxu0 0.0
      %1259 = vmatmul.mubr.f32.gmra.mrb[0].mxu0 %v1110
      %v1260 = vpop.f32.mrb[0].mxu0
      %v1261 = vadd.f32 0.0, %v1260
      %v1262 = vpop.f32.mrb[0].mxu0
      %1263 = vmatprep.mubr.f32.mxu0 0.0
      %1264 = vmatmul.mubr.f32.gmra.mrb[0].mxu0 %v1111
      %v1265 = vpop.f32.mrb[0].mxu0
      %v1266 = vadd.f32 0.0, %v1265
      %v1267 = vpop.f32.mrb[0].mxu0
      %1268 = vmatprep.mubr.f32.mxu0 0.0
      %1269 = vmatmul.mubr.f32.gmra.mrb[0].mxu0 %v1112
      %v1270 = vpop.f32.mrb[0].mxu0
      %v1271 = vadd.f32 0.0, %v1270
      %v1272 = vpop.f32.mrb[0].mxu0
      %1273 = vdwg.mxu0
      %1274 = vst [vmem:[#allocation7] sm:$0xff] %v1196
      %1275 = vst [vmem:[#allocation7 + $0x8] sm:$0xff] %v1201
      %1276 = vst [vmem:[#allocation7 + $0x10] sm:$0xff] %v1206
      %1277 = vst [vmem:[#allocation7 + $0x18] sm:$0xff] %v1211
      %1278 = vst [vmem:[#allocation7 + $0x20] sm:$0xff] %v1216
      %1279 = vst [vmem:[#allocation7 + $0x28] sm:$0xff] %v1221
      %1280 = vst [vmem:[#allocation7 + $0x30] sm:$0xff] %v1226
      %1281 = vst [vmem:[#allocation7 + $0x38] sm:$0xff] %v1231
      %1282 = vst [vmem:[#allocation7 + $0x40] sm:$0xff] %v1236
      %1283 = vst [vmem:[#allocation7 + $0x48] sm:$0xff] %v1241
      %1284 = vst [vmem:[#allocation7 + $0x50] sm:$0xff] %v1246
      %1285 = vst [vmem:[#allocation7 + $0x58] sm:$0xff] %v1251
      %1286 = vst [vmem:[#allocation7 + $0x60] sm:$0xff] %v1256
      %1287 = vst [vmem:[#allocation7 + $0x68] sm:$0xff] %v1261
      %1288 = vst [vmem:[#allocation7 + $0x70] sm:$0xff] %v1266
      %1289 = vst [vmem:[#allocation7 + $0x78] sm:$0xff] %v1271
    $region37: #{tpu_custom_call.1} parent=1 // pred_fallthru
      _
    // Predicated region
    $region38: #{tpu_custom_call.1} parent=1 // pred_check
      _
    $region39: #{tpu_custom_call.1} parent=1 // pred_check_branch
      %1291 = sbr.rel (0) target = $region41
    $region40: #{tpu_custom_call.1} parent=1 // pred_region
      %s1293 = ssub.s32 2048, 2048
      %1294 = vsyncadd [#allocation6], %s1293
      %s1295 = sshll.u32 [#allocation7], 4
      %s1296 = int_to_ptr.vmem [resolvable:$true] %s1295
      %1301 = dma.vmem_to_hbm [thread:$0]  %s1296, 2048, %s6, [#allocation6], 128, 128, 8
    $region41: #{tpu_custom_call.1} parent=1 // pred_fallthru
      _
    // Predicated region
    $region42: #{tpu_custom_call.1} parent=1 // pred_check
      _
    $region43: #{tpu_custom_call.1} parent=1 // pred_check_branch
      %1303 = sbr.rel (0) target = $region45
    $region44: #{tpu_custom_call.1} parent=1 // pred_region
      %1304 = dma.done [#allocation6], 2048
    $region45: #{tpu_custom_call.1} parent=1 // pred_fallthru
      _
    %1305 = vsyncpa [#allocation5], 1
    %1306 = vsyncpa [#allocation6], 1

// kernel: tpu_custom_call.1
$region0: #{tpu_custom_call.1}
  #allocation0 [shape = 'u32[]', space=smem, size = 0x4, offset = 0x4, fixed_abs, tag = 'smem constant byte address 0x4 - core index']
  #allocation1 [shape = 'u32[144,128]{1,0:T(1,128)}', space=vmem, size = 0x12000, scoped, tag = 'internal scratch']
  #allocation2 [shape = 'f32[128,128]{1,0:T(8,128)}', space=vmem, size = 0x10000, scoped, tag = 'scratch operand']
  #allocation3 [shape = 'f32[1,1]{1,0:T(1,128)S(1)}', space=vmem, size = 0x200, scoped, tag = 'scoped memory for tpu_custom_call.1']
  %s0 = inlined_call_operand.vmem [shape: s32[128,8], index: 0, kind: input, shape index: {}]
  %s1 = inlined_call_operand.vmem [shape: s32[1,128], index: 1, kind: input, shape index: {}]
  %s2 = inlined_call_operand.hbm [shape: f32[128,256], index: 2, kind: input, shape index: {}]
  %s3 = inlined_call_operand.vmem [shape: f32[1,128], index: 3, kind: input, shape index: {}]
  %s4 = inlined_call_operand.<no memory space> [shape: f32[1,1], index: 4, kind: input, shape index: {}]
  %s5 = inlined_call_operand.vmem [shape: f32[128,128], index: 5, kind: input, shape index: {}]
  %s6 = inlined_call_operand.hbm [shape: f32[128,128], index: 6, kind: output, shape index: {}]
  %s7 = sld [smem:[#allocation0]]
  $region46: #{tpu_custom_call.1} parent=0
    _
  %s9 = ssub.s32 1, %s7
  %s10 = scalar_select 0, %s9, %s7
  %v11 = vstv %s4
  %12 = vst [vmem:[#allocation3] sm:$0x1] %v11
  $region1: #{tpu_custom_call.1} parent=0
    #allocation4 [shape = 'u8[131072]{0}', space=vmem, size = 0x20000, scoped, tag = 'input window, operand 2, single buffered']
    #allocation5 [shape = 's32[1]{0}', space=sflag, size = 0x4, scoped, tag = 'scoped memory for tpu_custom_call.1']
    #allocation6 [shape = 's32[1]{0}', space=sflag, size = 0x4, scoped, tag = 'scoped memory for tpu_custom_call.1']
    #allocation7 [shape = 'u8[65536]{0}', space=vmem, size = 0x10000, scoped, tag = 'output window, operand 0, single buffered']
    %13 = vsyncpa [#allocation5], 0
    %14 = vsyncpa [#allocation6], 0
    // Predicated region
    $region2: #{tpu_custom_call.1} parent=1 // pred_check
      _
    $region3: #{tpu_custom_call.1} parent=1 // pred_check_branch
      %16 = sbr.rel (0) target = $region5
    $region4: #{tpu_custom_call.1} parent=1 // pred_region
      _
    $region5: #{tpu_custom_call.1} parent=1 // pred_fallthru
      _
    // Predicated region
    $region6: #{tpu_custom_call.1} parent=1 // pred_check
      _
    $region7: #{tpu_custom_call.1} parent=1 // pred_check_branch
      %18 = sbr.rel (0) target = $region9
    $region8: #{tpu_custom_call.1} parent=1 // pred_region
      _
    $region9: #{tpu_custom_call.1} parent=1 // pred_fallthru
      _
    // Predicated region
    $region10: #{tpu_custom_call.1} parent=1 // pred_check
      _
    $region11: #{tpu_custom_call.1} parent=1 // pred_check_branch
      %20 = sbr.rel (0) target = $region13
    $region12: #{tpu_custom_call.1} parent=1 // pred_region
      %s22 = ssub.s32 4096, 4096
      %23 = vsyncadd [#allocation5], %s22
      %s24 = sshll.u32 [#allocation4], 4
      %s25 = int_to_ptr.vmem [resolvable:$true] %s24
      %30 = dma.hbm_to_vmem [thread:$0]  %s2, 4096, %s25, [#allocation5], 256, 256, 16
    $region13: #{tpu_custom_call.1} parent=1 // pred_fallthru
      _
    // Predicated region
    $region14: #{tpu_custom_call.1} parent=1 // pred_check
      _
    $region15: #{tpu_custom_call.1} parent=1 // pred_check_branch
      %32 = sbr.rel (0) target = $region17
    $region16: #{tpu_custom_call.1} parent=1 // pred_region
      _
    $region17: #{tpu_custom_call.1} parent=1 // pred_fallthru
      _
    // Predicated region
    $region18: #{tpu_custom_call.1} parent=1 // pred_check
      _
    $region19: #{tpu_custom_call.1} parent=1 // pred_check_branch
      %34 = sbr.rel (0) target = $region21
    $region20: #{tpu_custom_call.1} parent=1 // pred_region
      _
    $region21: #{tpu_custom_call.1} parent=1 // pred_fallthru
      _
    // Predicated region
    $region22: #{tpu_custom_call.1} parent=1 // pred_check
      _
    $region23: #{tpu_custom_call.1} parent=1 // pred_check_branch
      %36 = sbr.rel (0) target = $region25
    $region24: #{tpu_custom_call.1} parent=1 // pred_region
      _
    $region25: #{tpu_custom_call.1} parent=1 // pred_fallthru
      _
    // Predicated region
    $region26: #{tpu_custom_call.1} parent=1 // pred_check
      _
    $region27: #{tpu_custom_call.1} parent=1 // pred_check_branch
      %38 = sbr.rel (0) target = $region29
    $region28: #{tpu_custom_call.1} parent=1 // pred_region
      %39 = dma.done [#allocation5], 4096
    $region29: #{tpu_custom_call.1} parent=1 // pred_fallthru
      _
    %p40 = scmp.eq.s32.totalorder 0, 0
    // Predicated region
    $region30: #{tpu_custom_call.1} parent=1 // pred_check
      %p41 = pneg %p40
    $region31: #{tpu_custom_call.1} parent=1 // pred_check_branch
      %43 = sbr.rel (%p41) target = $region33
    $region32: #{tpu_custom_call.1} parent=1 // pred_region
      %44 = vst [vmem:[#allocation2] sm:$0xff] 0.0
      %45 = vst [vmem:[#allocation2 + $0x8] sm:$0xff] 0.0
      %46 = vst [vmem:[#allocation2 + $0x10] sm:$0xff] 0.0
      %47 = vst [vmem:[#allocation2 + $0x18] sm:$0xff] 0.0
      %48 = vst [vmem:[#allocation2 + $0x20] sm:$0xff] 0.0
      %49 = vst [vmem:[#allocation2 + $0x28] sm:$0xff] 0.0
      %50 = vst [vmem:[#allocation2 + $0x30] sm:$0xff] 0.0
      %51 = vst [vmem:[#allocation2 + $0x38] sm:$0xff] 0.0
      %52 = vst [vmem:[#allocation2 + $0x40] sm:$0xff] 0.0
      %53 = vst [vmem:[#allocation2 + $0x48] sm:$0xff] 0.0
      %54 = vst [vmem:[#allocation2 + $0x50] sm:$0xff] 0.0
      %55 = vst [vmem:[#allocation2 + $0x58] sm:$0xff] 0.0
      %56 = vst [vmem:[#allocation2 + $0x60] sm:$0xff] 0.0
      %57 = vst [vmem:[#allocation2 + $0x68] sm:$0xff] 0.0
      %58 = vst [vmem:[#allocation2 + $0x70] sm:$0xff] 0.0
      %59 = vst [vmem:[#allocation2 + $0x78] sm:$0xff] 0.0
    $region33: #{tpu_custom_call.1} parent=1 // pred_fallthru
      _
    %v60 = vlaneseq
    %v61 = vand.u32 %v60, 127
    %v62 = vld [vmem:[%s0] sm:$0xff]
    %v63 = vld [vmem:[%s0 + $0x8] sm:$0xff]
    %v64 = vld [vmem:[%s0 + $0x10] sm:$0xff]
    %v65 = vld [vmem:[%s0 + $0x18] sm:$0xff]
    %v66 = vld [vmem:[%s0 + $0x20] sm:$0xff]
    %v67 = vld [vmem:[%s0 + $0x28] sm:$0xff]
    %v68 = vld [vmem:[%s0 + $0x30] sm:$0xff]
    %v69 = vld [vmem:[%s0 + $0x38] sm:$0xff]
    %v70 = vld [vmem:[%s0 + $0x40] sm:$0xff]
    %v71 = vld [vmem:[%s0 + $0x48] sm:$0xff]
    %v72 = vld [vmem:[%s0 + $0x50] sm:$0xff]
    %v73 = vld [vmem:[%s0 + $0x58] sm:$0xff]
    %v74 = vld [vmem:[%s0 + $0x60] sm:$0xff]
    %v75 = vld [vmem:[%s0 + $0x68] sm:$0xff]
    %v76 = vld [vmem:[%s0 + $0x70] sm:$0xff]
    %v77 = vld [vmem:[%s0 + $0x78] sm:$0xff]
    %78 = vset.pattern.permute.xlu0 0
    %79 = vperm.xlu0 %78, %v62
    %v80 = vpop.permute.xlu0 %79
    %81 = vset.pattern.permute.xlu0 0
    %82 = vperm.xlu0 %81, %v63
    %v83 = vpop.permute.xlu0 %82
    %84 = vset.pattern.permute.xlu0 0
    %85 = vperm.xlu0 %84, %v64
    %v86 = vpop.permute.xlu0 %85
    %87 = vset.pattern.permute.xlu0 0
    %88 = vperm.xlu0 %87, %v65
    %v89 = vpop.permute.xlu0 %88
    %90 = vset.pattern.permute.xlu0 0
    %91 = vperm.xlu0 %90, %v66
    %v92 = vpop.permute.xlu0 %91
    %93 = vset.pattern.permute.xlu0 0
    %94 = vperm.xlu0 %93, %v67
    %v95 = vpop.permute.xlu0 %94
    %96 = vset.pattern.permute.xlu0 0
    %97 = vperm.xlu0 %96, %v68
    %v98 = vpop.permute.xlu0 %97
    %99 = vset.pattern.permute.xlu0 0
    %100 = vperm.xlu0 %99, %v69
    %v101 = vpop.permute.xlu0 %100
    %102 = vset.pattern.permute.xlu0 0
    %103 = vperm.xlu0 %102, %v70
    %v104 = vpop.permute.xlu0 %103
    %105 = vset.pattern.permute.xlu0 0
    %106 = vperm.xlu0 %105, %v71
    %v107 = vpop.permute.xlu0 %106
    %108 = vset.pattern.permute.xlu0 0
    %109 = vperm.xlu0 %108, %v72
    %v110 = vpop.permute.xlu0 %109
    %111 = vset.pattern.permute.xlu0 0
    %112 = vperm.xlu0 %111, %v73
    %v113 = vpop.permute.xlu0 %112
    %114 = vset.pattern.permute.xlu0 0
    %115 = vperm.xlu0 %114, %v74
    %v116 = vpop.permute.xlu0 %115
    %117 = vset.pattern.permute.xlu0 0
    %118 = vperm.xlu0 %117, %v75
    %v119 = vpop.permute.xlu0 %118
    %120 = vset.pattern.permute.xlu0 0
    %121 = vperm.xlu0 %120, %v76
    %v122 = vpop.permute.xlu0 %121
    %123 = vset.pattern.permute.xlu0 0
    %124 = vperm.xlu0 %123, %v77
    %v125 = vpop.permute.xlu0 %124
    %vm126 = vcmp.eq.s32.totalorder %v61, %v80
    %vm127 = vcmp.eq.s32.totalorder %v61, %v83
    %vm128 = vcmp.eq.s32.totalorder %v61, %v86
    %vm129 = vcmp.eq.s32.totalorder %v61, %v89
    %vm130 = vcmp.eq.s32.totalorder %v61, %v92
    %vm131 = vcmp.eq.s32.totalorder %v61, %v95
    %vm132 = vcmp.eq.s32.totalorder %v61, %v98
    %vm133 = vcmp.eq.s32.totalorder %v61, %v101
    %vm134 = vcmp.eq.s32.totalorder %v61, %v104
    %vm135 = vcmp.eq.s32.totalorder %v61, %v107
    %vm136 = vcmp.eq.s32.totalorder %v61, %v110
    %vm137 = vcmp.eq.s32.totalorder %v61, %v113
    %vm138 = vcmp.eq.s32.totalorder %v61, %v116
    %vm139 = vcmp.eq.s32.totalorder %v61, %v119
    %vm140 = vcmp.eq.s32.totalorder %v61, %v122
    %vm141 = vcmp.eq.s32.totalorder %v61, %v125
    %142 = vset.pattern.permute.xlu0 1
    %143 = vperm.xlu0 %142, %v62
    %v144 = vpop.permute.xlu0 %143
    %145 = vset.pattern.permute.xlu0 1
    %146 = vperm.xlu0 %145, %v63
    %v147 = vpop.permute.xlu0 %146
    %148 = vset.pattern.permute.xlu0 1
    %149 = vperm.xlu0 %148, %v64
    %v150 = vpop.permute.xlu0 %149
    %151 = vset.pattern.permute.xlu0 1
    %152 = vperm.xlu0 %151, %v65
    %v153 = vpop.permute.xlu0 %152
    %154 = vset.pattern.permute.xlu0 1
    %155 = vperm.xlu0 %154, %v66
    %v156 = vpop.permute.xlu0 %155
    %157 = vset.pattern.permute.xlu0 1
    %158 = vperm.xlu0 %157, %v67
    %v159 = vpop.permute.xlu0 %158
    %160 = vset.pattern.permute.xlu0 1
    %161 = vperm.xlu0 %160, %v68
    %v162 = vpop.permute.xlu0 %161
    %163 = vset.pattern.permute.xlu0 1
    %164 = vperm.xlu0 %163, %v69
    %v165 = vpop.permute.xlu0 %164
    %166 = vset.pattern.permute.xlu0 1
    %167 = vperm.xlu0 %166, %v70
    %v168 = vpop.permute.xlu0 %167
    %169 = vset.pattern.permute.xlu0 1
    %170 = vperm.xlu0 %169, %v71
    %v171 = vpop.permute.xlu0 %170
    %172 = vset.pattern.permute.xlu0 1
    %173 = vperm.xlu0 %172, %v72
    %v174 = vpop.permute.xlu0 %173
    %175 = vset.pattern.permute.xlu0 1
    %176 = vperm.xlu0 %175, %v73
    %v177 = vpop.permute.xlu0 %176
    %178 = vset.pattern.permute.xlu0 1
    %179 = vperm.xlu0 %178, %v74
    %v180 = vpop.permute.xlu0 %179
    %181 = vset.pattern.permute.xlu0 1
    %182 = vperm.xlu0 %181, %v75
    %v183 = vpop.permute.xlu0 %182
    %184 = vset.pattern.permute.xlu0 1
    %185 = vperm.xlu0 %184, %v76
    %v186 = vpop.permute.xlu0 %185
    %187 = vset.pattern.permute.xlu0 1
    %188 = vperm.xlu0 %187, %v77
    %v189 = vpop.permute.xlu0 %188
    %vm190 = vcmp.eq.s32.totalorder %v61, %v144
    %vm191 = vcmp.eq.s32.totalorder %v61, %v147
    %vm192 = vcmp.eq.s32.totalorder %v61, %v150
    %vm193 = vcmp.eq.s32.totalorder %v61, %v153
    %vm194 = vcmp.eq.s32.totalorder %v61, %v156
    %vm195 = vcmp.eq.s32.totalorder %v61, %v159
    %vm196 = vcmp.eq.s32.totalorder %v61, %v162
    %vm197 = vcmp.eq.s32.totalorder %v61, %v165
    %vm198 = vcmp.eq.s32.totalorder %v61, %v168
    %vm199 = vcmp.eq.s32.totalorder %v61, %v171
    %vm200 = vcmp.eq.s32.totalorder %v61, %v174
    %vm201 = vcmp.eq.s32.totalorder %v61, %v177
    %vm202 = vcmp.eq.s32.totalorder %v61, %v180
    %vm203 = vcmp.eq.s32.totalorder %v61, %v183
    %vm204 = vcmp.eq.s32.totalorder %v61, %v186
    %vm205 = vcmp.eq.s32.totalorder %v61, %v189
    %vm206 = vmor %vm126, %vm190
    %vm207 = vmor %vm127, %vm191
    %vm208 = vmor %vm128, %vm192
    %vm209 = vmor %vm129, %vm193
    %vm210 = vmor %vm130, %vm194
    %vm211 = vmor %vm131, %vm195
    %vm212 = vmor %vm132, %vm196
    %vm213 = vmor %vm133, %vm197
    %vm214 = vmor %vm134, %vm198
    %vm215 = vmor %vm135, %vm199
    %vm216 = vmor %vm136, %vm200
    %vm217 = vmor %vm137, %vm201
    %vm218 = vmor %vm138, %vm202
    %vm219 = vmor %vm139, %vm203
    %vm220 = vmor %vm140, %vm204
    %vm221 = vmor %vm141, %vm205
    %222 = vset.pattern.permute.xlu0 2
    %223 = vperm.xlu0 %222, %v62
    %v224 = vpop.permute.xlu0 %223
    %225 = vset.pattern.permute.xlu0 2
    %226 = vperm.xlu0 %225, %v63
    %v227 = vpop.permute.xlu0 %226
    %228 = vset.pattern.permute.xlu0 2
    %229 = vperm.xlu0 %228, %v64
    %v230 = vpop.permute.xlu0 %229
    %231 = vset.pattern.permute.xlu0 2
    %232 = vperm.xlu0 %231, %v65
    %v233 = vpop.permute.xlu0 %232
    %234 = vset.pattern.permute.xlu0 2
    %235 = vperm.xlu0 %234, %v66
    %v236 = vpop.permute.xlu0 %235
    %237 = vset.pattern.permute.xlu0 2
    %238 = vperm.xlu0 %237, %v67
    %v239 = vpop.permute.xlu0 %238
    %240 = vset.pattern.permute.xlu0 2
    %241 = vperm.xlu0 %240, %v68
    %v242 = vpop.permute.xlu0 %241
    %243 = vset.pattern.permute.xlu0 2
    %244 = vperm.xlu0 %243, %v69
    %v245 = vpop.permute.xlu0 %244
    %246 = vset.pattern.permute.xlu0 2
    %247 = vperm.xlu0 %246, %v70
    %v248 = vpop.permute.xlu0 %247
    %249 = vset.pattern.permute.xlu0 2
    %250 = vperm.xlu0 %249, %v71
    %v251 = vpop.permute.xlu0 %250
    %252 = vset.pattern.permute.xlu0 2
    %253 = vperm.xlu0 %252, %v72
    %v254 = vpop.permute.xlu0 %253
    %255 = vset.pattern.permute.xlu0 2
    %256 = vperm.xlu0 %255, %v73
    %v257 = vpop.permute.xlu0 %256
    %258 = vset.pattern.permute.xlu0 2
    %259 = vperm.xlu0 %258, %v74
    %v260 = vpop.permute.xlu0 %259
    %261 = vset.pattern.permute.xlu0 2
    %262 = vperm.xlu0 %261, %v75
    %v263 = vpop.permute.xlu0 %262
    %264 = vset.pattern.permute.xlu0 2
    %265 = vperm.xlu0 %264, %v76
    %v266 = vpop.permute.xlu0 %265
    %267 = vset.pattern.permute.xlu0 2
    %268 = vperm.xlu0 %267, %v77
    %v269 = vpop.permute.xlu0 %268
    %vm270 = vcmp.eq.s32.totalorder %v61, %v224
    %vm271 = vcmp.eq.s32.totalorder %v61, %v227
    %vm272 = vcmp.eq.s32.totalorder %v61, %v230
    %vm273 = vcmp.eq.s32.totalorder %v61, %v233
    %vm274 = vcmp.eq.s32.totalorder %v61, %v236
    %vm275 = vcmp.eq.s32.totalorder %v61, %v239
    %vm276 = vcmp.eq.s32.totalorder %v61, %v242
    %vm277 = vcmp.eq.s32.totalorder %v61, %v245
    %vm278 = vcmp.eq.s32.totalorder %v61, %v248
    %vm279 = vcmp.eq.s32.totalorder %v61, %v251
    %vm280 = vcmp.eq.s32.totalorder %v61, %v254
    %vm281 = vcmp.eq.s32.totalorder %v61, %v257
    %vm282 = vcmp.eq.s32.totalorder %v61, %v260
    %vm283 = vcmp.eq.s32.totalorder %v61, %v263
    %vm284 = vcmp.eq.s32.totalorder %v61, %v266
    %vm285 = vcmp.eq.s32.totalorder %v61, %v269
    %vm286 = vmor %vm206, %vm270
    %vm287 = vmor %vm207, %vm271
    %vm288 = vmor %vm208, %vm272
    %vm289 = vmor %vm209, %vm273
    %vm290 = vmor %vm210, %vm274
    %vm291 = vmor %vm211, %vm275
    %vm292 = vmor %vm212, %vm276
    %vm293 = vmor %vm213, %vm277
    %vm294 = vmor %vm214, %vm278
    %vm295 = vmor %vm215, %vm279
    %vm296 = vmor %vm216, %vm280
    %vm297 = vmor %vm217, %vm281
    %vm298 = vmor %vm218, %vm282
    %vm299 = vmor %vm219, %vm283
    %vm300 = vmor %vm220, %vm284
    %vm301 = vmor %vm221, %vm285
    %v302 = vsel %vm286, 1, 0
    %v303 = vsel %vm287, 1, 0
    %v304 = vsel %vm288, 1, 0
    %v305 = vsel %vm289, 1, 0
    %v306 = vsel %vm290, 1, 0
    %v307 = vsel %vm291, 1, 0
    %v308 = vsel %vm292, 1, 0
    %v309 = vsel %vm293, 1, 0
    %v310 = vsel %vm294, 1, 0
    %v311 = vsel %vm295, 1, 0
    %v312 = vsel %vm296, 1, 0
    %v313 = vsel %vm297, 1, 0
    %v314 = vsel %vm298, 1, 0
    %v315 = vsel %vm299, 1, 0
    %v316 = vsel %vm300, 1, 0
    %v317 = vsel %vm301, 1, 0
    %v318 = vcvt.s32.f32 %v302
    %v319 = vcvt.s32.f32 %v303
    %v320 = vcvt.s32.f32 %v304
    %v321 = vcvt.s32.f32 %v305
    %v322 = vcvt.s32.f32 %v306
    %v323 = vcvt.s32.f32 %v307
    %v324 = vcvt.s32.f32 %v308
    %v325 = vcvt.s32.f32 %v309
    %v326 = vcvt.s32.f32 %v310
    %v327 = vcvt.s32.f32 %v311
    %v328 = vcvt.s32.f32 %v312
    %v329 = vcvt.s32.f32 %v313
    %v330 = vcvt.s32.f32 %v314
    %v331 = vcvt.s32.f32 %v315
    %v332 = vcvt.s32.f32 %v316
    %v333 = vcvt.s32.f32 %v317
    %v334 = vld [vmem:[#allocation4] sm:$0xff]
    %v335 = vld [vmem:[#allocation4 + $0x8] sm:$0xff]
    %v336 = vld [vmem:[#allocation4 + $0x10] sm:$0xff]
    %v337 = vld [vmem:[#allocation4 + $0x18] sm:$0xff]
    %v338 = vld [vmem:[#allocation4 + $0x20] sm:$0xff]
    %v339 = vld [vmem:[#allocation4 + $0x28] sm:$0xff]
    %v340 = vld [vmem:[#allocation4 + $0x30] sm:$0xff]
    %v341 = vld [vmem:[#allocation4 + $0x38] sm:$0xff]
    %v342 = vld [vmem:[#allocation4 + $0x40] sm:$0xff]
    %v343 = vld [vmem:[#allocation4 + $0x48] sm:$0xff]
    %v344 = vld [vmem:[#allocation4 + $0x50] sm:$0xff]
    %v345 = vld [vmem:[#allocation4 + $0x58] sm:$0xff]
    %v346 = vld [vmem:[#allocation4 + $0x60] sm:$0xff]
    %v347 = vld [vmem:[#allocation4 + $0x68] sm:$0xff]
    %v348 = vld [vmem:[#allocation4 + $0x70] sm:$0xff]
    %v349 = vld [vmem:[#allocation4 + $0x78] sm:$0xff]
    %v350 = vld [vmem:[#allocation4 + $0x80] sm:$0xff]
    %v351 = vld [vmem:[#allocation4 + $0x88] sm:$0xff]
    %v352 = vld [vmem:[#allocation4 + $0x90] sm:$0xff]
    %v353 = vld [vmem:[#allocation4 + $0x98] sm:$0xff]
    %v354 = vld [vmem:[#allocation4 + $0xa0] sm:$0xff]
    %v355 = vld [vmem:[#allocation4 + $0xa8] sm:$0xff]
    %v356 = vld [vmem:[#allocation4 + $0xb0] sm:$0xff]
    %v357 = vld [vmem:[#allocation4 + $0xb8] sm:$0xff]
    %v358 = vld [vmem:[#allocation4 + $0xc0] sm:$0xff]
    %v359 = vld [vmem:[#allocation4 + $0xc8] sm:$0xff]
    %v360 = vld [vmem:[#allocation4 + $0xd0] sm:$0xff]
    %v361 = vld [vmem:[#allocation4 + $0xd8] sm:$0xff]
    %v362 = vld [vmem:[#allocation4 + $0xe0] sm:$0xff]
    %v363 = vld [vmem:[#allocation4 + $0xe8] sm:$0xff]
    %v364 = vld [vmem:[#allocation4 + $0xf0] sm:$0xff]
    %v365 = vld [vmem:[#allocation4 + $0xf8] sm:$0xff]
    %366 = vmatprep.subr.mxu0 %v335
    %367 = vmatpush1.msra.mxu0 %v334
    %368 = vmatprep.subr.mxu0 %v337
    %369 = vmatpush1.msra.mxu0 %v336
    %370 = vmatprep.subr.mxu0 %v339
    %371 = vmatpush1.msra.mxu0 %v338
    %372 = vmatprep.subr.mxu0 %v341
    %373 = vmatpush1.msra.mxu0 %v340
    %374 = vmatprep.subr.mxu0 %v343
    %375 = vmatpush1.msra.mxu0 %v342
    %376 = vmatprep.subr.mxu0 %v345
    %377 = vmatpush1.msra.mxu0 %v344
    %378 = vmatprep.subr.mxu0 %v347
    %379 = vmatpush1.msra.mxu0 %v346
    %380 = vmatprep.subr.mxu0 %v349
    %381 = vmatpush1.msra.mxu0 %v348
    %382 = vmatprep.subr.mxu0 %v351
    %383 = vmatpush1.msra.mxu0 %v350
    %384 = vmatprep.subr.mxu0 %v353
    %385 = vmatpush1.msra.mxu0 %v352
    %386 = vmatprep.subr.mxu0 %v355
    %387 = vmatpush1.msra.mxu0 %v354
    %388 = vmatprep.subr.mxu0 %v357
    %389 = vmatpush1.msra.mxu0 %v356
    %390 = vmatprep.subr.mxu0 %v359
    %391 = vmatpush1.msra.mxu0 %v358
    %392 = vmatprep.subr.mxu0 %v361
    %393 = vmatpush1.msra.mxu0 %v360
    %394 = vmatprep.subr.mxu0 %v363
    %395 = vmatpush1.msra.mxu0 %v362
    %396 = vmatprep.subr.mxu0 %v365
    %397 = vmatpush1.msra.mxu0 %v364
    %398 = vmatprep.subr.mxu0 0.0
    %399 = vmatpush1.msra.mxu0 0.0
    %400 = vmatprep.subr.mxu0 0.0
    %401 = vmatpush1.msra.mxu0 0.0
    %402 = vmatprep.subr.mxu0 0.0
    %403 = vmatpush1.msra.mxu0 0.0
    %404 = vmatprep.subr.mxu0 0.0
    %405 = vmatpush1.msra.mxu0 0.0
    %406 = vmatprep.subr.mxu0 0.0
    %407 = vmatpush1.msra.mxu0 0.0
    %408 = vmatprep.subr.mxu0 0.0
    %409 = vmatpush1.msra.mxu0 0.0
    %410 = vmatprep.subr.mxu0 0.0
    %411 = vmatpush1.msra.mxu0 0.0
    %412 = vmatprep.subr.mxu0 0.0
    %413 = vmatpush1.msra.mxu0 0.0
    %414 = vmatprep.subr.mxu0 0.0
    %415 = vmatpush1.msra.mxu0 0.0
    %416 = vmatprep.subr.mxu0 0.0
    %417 = vmatpush1.msra.mxu0 0.0
    %418 = vmatprep.subr.mxu0 0.0
    %419 = vmatpush1.msra.mxu0 0.0
    %420 = vmatprep.subr.mxu0 0.0
    %421 = vmatpush1.msra.mxu0 0.0
    %422 = vmatprep.subr.mxu0 0.0
    %423 = vmatpush1.msra.mxu0 0.0
    %424 = vmatprep.subr.mxu0 0.0
    %425 = vmatpush1.msra.mxu0 0.0
    %426 = vmatprep.subr.mxu0 0.0
    %427 = vmatpush1.msra.mxu0 0.0
    %428 = vmatprep.subr.mxu0 0.0
    %429 = vmatpush1.msra.mxu0 0.0
    %430 = vmatprep.mubr.f32.mxu0 0.0
    %431 = vmatmul.mubr.f32.gmra.mrb[0].mxu0 %v318
    %v432 = vpop.f32.mrb[0].mxu0
    %v433 = vadd.f32 0.0, %v432
    %v434 = vpop.f32.mrb[0].mxu0
    %v435 = vadd.f32 0.0, %v434
    %436 = vmatprep.mubr.f32.mxu0 0.0
    %437 = vmatmul.mubr.f32.gmra.mrb[0].mxu0 %v319
    %v438 = vpop.f32.mrb[0].mxu0
    %v439 = vadd.f32 0.0, %v438
    %v440 = vpop.f32.mrb[0].mxu0
    %v441 = vadd.f32 0.0, %v440
    %442 = vmatprep.mubr.f32.mxu0 0.0
    %443 = vmatmul.mubr.f32.gmra.mrb[0].mxu0 %v320
    %v444 = vpop.f32.mrb[0].mxu0
    %v445 = vadd.f32 0.0, %v444
    %v446 = vpop.f32.mrb[0].mxu0
    %v447 = vadd.f32 0.0, %v446
    %448 = vmatprep.mubr.f32.mxu0 0.0
    %449 = vmatmul.mubr.f32.gmra.mrb[0].mxu0 %v321
    %v450 = vpop.f32.mrb[0].mxu0
    %v451 = vadd.f32 0.0, %v450
    %v452 = vpop.f32.mrb[0].mxu0
    %v453 = vadd.f32 0.0, %v452
    %454 = vmatprep.mubr.f32.mxu0 0.0
    %455 = vmatmul.mubr.f32.gmra.mrb[0].mxu0 %v322
    %v456 = vpop.f32.mrb[0].mxu0
    %v457 = vadd.f32 0.0, %v456
    %v458 = vpop.f32.mrb[0].mxu0
    %v459 = vadd.f32 0.0, %v458
    %460 = vmatprep.mubr.f32.mxu0 0.0
    %461 = vmatmul.mubr.f32.gmra.mrb[0].mxu0 %v323
    %v462 = vpop.f32.mrb[0].mxu0
    %v463 = vadd.f32 0.0, %v462
    %v464 = vpop.f32.mrb[0].mxu0
    %v465 = vadd.f32 0.0, %v464
    %466 = vmatprep.mubr.f32.mxu0 0.0
    %467 = vmatmul.mubr.f32.gmra.mrb[0].mxu0 %v324
    %v468 = vpop.f32.mrb[0].mxu0
    %v469 = vadd.f32 0.0, %v468
    %v470 = vpop.f32.mrb[0].mxu0
    %v471 = vadd.f32 0.0, %v470
    %472 = vmatprep.mubr.f32.mxu0 0.0
    %473 = vmatmul.mubr.f32.gmra.mrb[0].mxu0 %v325
    %v474 = vpop.f32.mrb[0].mxu0
    %v475 = vadd.f32 0.0, %v474
    %v476 = vpop.f32.mrb[0].mxu0
    %v477 = vadd.f32 0.0, %v476
    %478 = vmatprep.mubr.f32.mxu0 0.0
    %479 = vmatmul.mubr.f32.gmra.mrb[0].mxu0 %v326
    %v480 = vpop.f32.mrb[0].mxu0
    %v481 = vadd.f32 0.0, %v480
    %v482 = vpop.f32.mrb[0].mxu0
    %v483 = vadd.f32 0.0, %v482
    %484 = vmatprep.mubr.f32.mxu0 0.0
    %485 = vmatmul.mubr.f32.gmra.mrb[0].mxu0 %v327
    %v486 = vpop.f32.mrb[0].mxu0
    %v487 = vadd.f32 0.0, %v486
    %v488 = vpop.f32.mrb[0].mxu0
    %v489 = vadd.f32 0.0, %v488
    %490 = vmatprep.mubr.f32.mxu0 0.0
    %491 = vmatmul.mubr.f32.gmra.mrb[0].mxu0 %v328
    %v492 = vpop.f32.mrb[0].mxu0
    %v493 = vadd.f32 0.0, %v492
    %v494 = vpop.f32.mrb[0].mxu0
    %v495 = vadd.f32 0.0, %v494
    %496 = vmatprep.mubr.f32.mxu0 0.0
    %497 = vmatmul.mubr.f32.gmra.mrb[0].mxu0 %v329
    %v498 = vpop.f32.mrb[0].mxu0
    %v499 = vadd.f32 0.0, %v498
    %v500 = vpop.f32.mrb[0].mxu0
    %v501 = vadd.f32 0.0, %v500
    %502 = vmatprep.mubr.f32.mxu0 0.0
    %503 = vmatmul.mubr.f32.gmra.mrb[0].mxu0 %v330
    %v504 = vpop.f32.mrb[0].mxu0
    %v505 = vadd.f32 0.0, %v504
    %v506 = vpop.f32.mrb[0].mxu0
    %v507 = vadd.f32 0.0, %v506
    %508 = vmatprep.mubr.f32.mxu0 0.0
    %509 = vmatmul.mubr.f32.gmra.mrb[0].mxu0 %v331
    %v510 = vpop.f32.mrb[0].mxu0
    %v511 = vadd.f32 0.0, %v510
    %v512 = vpop.f32.mrb[0].mxu0
    %v513 = vadd.f32 0.0, %v512
    %514 = vmatprep.mubr.f32.mxu0 0.0
    %515 = vmatmul.mubr.f32.gmra.mrb[0].mxu0 %v332
    %v516 = vpop.f32.mrb[0].mxu0
    %v517 = vadd.f32 0.0, %v516
    %v518 = vpop.f32.mrb[0].mxu0
    %v519 = vadd.f32 0.0, %v518
    %520 = vmatprep.mubr.f32.mxu0 0.0
    %521 = vmatmul.mubr.f32.gmra.mrb[0].mxu0 %v333
    %v522 = vpop.f32.mrb[0].mxu0
    %v523 = vadd.f32 0.0, %v522
    %v524 = vpop.f32.mrb[0].mxu0
    %v525 = vadd.f32 0.0, %v524
    %526 = vdwg.mxu0
    %v527 = vmax.f32 %v435, 0.0
    %v528 = vmax.f32 %v441, 0.0
    %v529 = vmax.f32 %v447, 0.0
    %v530 = vmax.f32 %v453, 0.0
    %v531 = vmax.f32 %v459, 0.0
    %v532 = vmax.f32 %v465, 0.0
    %v533 = vmax.f32 %v471, 0.0
    %v534 = vmax.f32 %v477, 0.0
    %v535 = vmax.f32 %v483, 0.0
    %v536 = vmax.f32 %v489, 0.0
    %v537 = vmax.f32 %v495, 0.0
    %v538 = vmax.f32 %v501, 0.0
    %v539 = vmax.f32 %v507, 0.0
    %v540 = vmax.f32 %v513, 0.0
    %v541 = vmax.f32 %v519, 0.0
    %v542 = vmax.f32 %v525, 0.0
    %v543 = vld [vmem:[%s3] sm:$0x1]
    %v545 = vlaneseq
    %v546 = vshrl.u32 %v545, 7
    %v547 = vsub.s32 0, %v546
    %v548 = vrot.slane %v543, %v547
    %v550 = vmul.f32 %v527, %v548
    %v551 = vmul.f32 %v528, %v548
    %v552 = vmul.f32 %v529, %v548
    %v553 = vmul.f32 %v530, %v548
    %v554 = vmul.f32 %v531, %v548
    %v555 = vmul.f32 %v532, %v548
    %v556 = vmul.f32 %v533, %v548
    %v557 = vmul.f32 %v534, %v548
    %v558 = vmul.f32 %v535, %v548
    %v559 = vmul.f32 %v536, %v548
    %v560 = vmul.f32 %v537, %v548
    %v561 = vmul.f32 %v538, %v548
    %v562 = vmul.f32 %v539, %v548
    %v563 = vmul.f32 %v540, %v548
    %v564 = vmul.f32 %v541, %v548
    %v565 = vmul.f32 %v542, %v548
    %566 = vadd.xlane.f32.xlu0 %v550
    %v567 = vpop.xlane.xlu0 %566
    %568 = vadd.xlane.f32.xlu0 %v551
    %v569 = vpop.xlane.xlu0 %568
    %570 = vadd.xlane.f32.xlu0 %v552
    %v571 = vpop.xlane.xlu0 %570
    %572 = vadd.xlane.f32.xlu0 %v553
    %v573 = vpop.xlane.xlu0 %572
    %574 = vadd.xlane.f32.xlu0 %v554
    %v575 = vpop.xlane.xlu0 %574
    %576 = vadd.xlane.f32.xlu0 %v555
    %v577 = vpop.xlane.xlu0 %576
    %578 = vadd.xlane.f32.xlu0 %v556
    %v579 = vpop.xlane.xlu0 %578
    %580 = vadd.xlane.f32.xlu0 %v557
    %v581 = vpop.xlane.xlu0 %580
    %582 = vadd.xlane.f32.xlu0 %v558
    %v583 = vpop.xlane.xlu0 %582
    %584 = vadd.xlane.f32.xlu0 %v559
    %v585 = vpop.xlane.xlu0 %584
    %586 = vadd.xlane.f32.xlu0 %v560
    %v587 = vpop.xlane.xlu0 %586
    %588 = vadd.xlane.f32.xlu0 %v561
    %v589 = vpop.xlane.xlu0 %588
    %590 = vadd.xlane.f32.xlu0 %v562
    %v591 = vpop.xlane.xlu0 %590
    %592 = vadd.xlane.f32.xlu0 %v563
    %v593 = vpop.xlane.xlu0 %592
    %594 = vadd.xlane.f32.xlu0 %v564
    %v595 = vpop.xlane.xlu0 %594
    %596 = vadd.xlane.f32.xlu0 %v565
    %v597 = vpop.xlane.xlu0 %596
    %v598 = vld [vmem:[#allocation3] sm:$0x1]
    %v600 = vlaneseq
    %v601 = vshrl.u32 %v600, 7
    %v602 = vsub.s32 0, %v601
    %v603 = vrot.slane %v598, %v602
    %v605 = vadd.f32 %v567, %v603
    %v606 = vadd.f32 %v569, %v603
    %v607 = vadd.f32 %v571, %v603
    %v608 = vadd.f32 %v573, %v603
    %v609 = vadd.f32 %v575, %v603
    %v610 = vadd.f32 %v577, %v603
    %v611 = vadd.f32 %v579, %v603
    %v612 = vadd.f32 %v581, %v603
    %v613 = vadd.f32 %v583, %v603
    %v614 = vadd.f32 %v585, %v603
    %v615 = vadd.f32 %v587, %v603
    %v616 = vadd.f32 %v589, %v603
    %v617 = vadd.f32 %v591, %v603
    %v618 = vadd.f32 %v593, %v603
    %v619 = vadd.f32 %v595, %v603
    %v620 = vadd.f32 %v597, %v603
    %v621 = vxor.u32 %v605, 2147483648
    %v622 = vxor.u32 %v606, 2147483648
    %v623 = vxor.u32 %v607, 2147483648
    %v624 = vxor.u32 %v608, 2147483648
    %v625 = vxor.u32 %v609, 2147483648
    %v626 = vxor.u32 %v610, 2147483648
    %v627 = vxor.u32 %v611, 2147483648
    %v628 = vxor.u32 %v612, 2147483648
    %v629 = vxor.u32 %v613, 2147483648
    %v630 = vxor.u32 %v614, 2147483648
    %v631 = vxor.u32 %v615, 2147483648
    %v632 = vxor.u32 %v616, 2147483648
    %v633 = vxor.u32 %v617, 2147483648
    %v634 = vxor.u32 %v618, 2147483648
    %v635 = vxor.u32 %v619, 2147483648
    %v636 = vxor.u32 %v620, 2147483648
    %v637 = vmul.f32 %v621, 1.442695
    %v638 = vpow.pop %v637
    %v639 = vmul.f32 %v622, 1.442695
    %v640 = vpow.pop %v639
    %v641 = vmul.f32 %v623, 1.442695
    %v642 = vpow.pop %v641
    %v643 = vmul.f32 %v624, 1.442695
    %v644 = vpow.pop %v643
    %v645 = vmul.f32 %v625, 1.442695
    %v646 = vpow.pop %v645
    %v647 = vmul.f32 %v626, 1.442695
    %v648 = vpow.pop %v647
    %v649 = vmul.f32 %v627, 1.442695
    %v650 = vpow.pop %v649
    %v651 = vmul.f32 %v628, 1.442695
    %v652 = vpow.pop %v651
    %v653 = vmul.f32 %v629, 1.442695
    %v654 = vpow.pop %v653
    %v655 = vmul.f32 %v630, 1.442695
    %v656 = vpow.pop %v655
    %v657 = vmul.f32 %v631, 1.442695
    %v658 = vpow.pop %v657
    %v659 = vmul.f32 %v632, 1.442695
    %v660 = vpow.pop %v659
    %v661 = vmul.f32 %v633, 1.442695
    %v662 = vpow.pop %v661
    %v663 = vmul.f32 %v634, 1.442695
    %v664 = vpow.pop %v663
    %v665 = vmul.f32 %v635, 1.442695
    %v666 = vpow.pop %v665
    %v667 = vmul.f32 %v636, 1.442695
    %v668 = vpow.pop %v667
    %v669 = vadd.f32 %v638, 1.0
    %v670 = vadd.f32 %v640, 1.0
    %v671 = vadd.f32 %v642, 1.0
    %v672 = vadd.f32 %v644, 1.0
    %v673 = vadd.f32 %v646, 1.0
    %v674 = vadd.f32 %v648, 1.0
    %v675 = vadd.f32 %v650, 1.0
    %v676 = vadd.f32 %v652, 1.0
    %v677 = vadd.f32 %v654, 1.0
    %v678 = vadd.f32 %v656, 1.0
    %v679 = vadd.f32 %v658, 1.0
    %v680 = vadd.f32 %v660, 1.0
    %v681 = vadd.f32 %v662, 1.0
    %v682 = vadd.f32 %v664, 1.0
    %v683 = vadd.f32 %v666, 1.0
    %v684 = vadd.f32 %v668, 1.0
    %v685 = vrcp.pop %v669
    %v686 = vmul.f32 1.0, %v685
    %v687 = vrcp.pop %v670
    %v688 = vmul.f32 1.0, %v687
    %v689 = vrcp.pop %v671
    %v690 = vmul.f32 1.0, %v689
    %v691 = vrcp.pop %v672
    %v692 = vmul.f32 1.0, %v691
    %v693 = vrcp.pop %v673
    %v694 = vmul.f32 1.0, %v693
    %v695 = vrcp.pop %v674
    %v696 = vmul.f32 1.0, %v695
    %v697 = vrcp.pop %v675
    %v698 = vmul.f32 1.0, %v697
    %v699 = vrcp.pop %v676
    %v700 = vmul.f32 1.0, %v699
    %v701 = vrcp.pop %v677
    %v702 = vmul.f32 1.0, %v701
    %v703 = vrcp.pop %v678
    %v704 = vmul.f32 1.0, %v703
    %v705 = vrcp.pop %v679
    %v706 = vmul.f32 1.0, %v705
    %v707 = vrcp.pop %v680
    %v708 = vmul.f32 1.0, %v707
    %v709 = vrcp.pop %v681
    %v710 = vmul.f32 1.0, %v709
    %v711 = vrcp.pop %v682
    %v712 = vmul.f32 1.0, %v711
    %v713 = vrcp.pop %v683
    %v714 = vmul.f32 1.0, %v713
    %v715 = vrcp.pop %v684
    %v716 = vmul.f32 1.0, %v715
    %718 = vset.pattern.permute.xlu0 0
    %719 = vperm.xlu0 %718, %v686
    %v720 = vpop.permute.xlu0 %719
    %723 = vset.pattern.permute.xlu0 0
    %724 = vperm.xlu0 %723, %v688
    %v725 = vpop.permute.xlu0 %724
    %728 = vset.pattern.permute.xlu0 0
    %729 = vperm.xlu0 %728, %v690
    %v730 = vpop.permute.xlu0 %729
    %733 = vset.pattern.permute.xlu0 0
    %734 = vperm.xlu0 %733, %v692
    %v735 = vpop.permute.xlu0 %734
    %738 = vset.pattern.permute.xlu0 0
    %739 = vperm.xlu0 %738, %v694
    %v740 = vpop.permute.xlu0 %739
    %743 = vset.pattern.permute.xlu0 0
    %744 = vperm.xlu0 %743, %v696
    %v745 = vpop.permute.xlu0 %744
    %748 = vset.pattern.permute.xlu0 0
    %749 = vperm.xlu0 %748, %v698
    %v750 = vpop.permute.xlu0 %749
    %753 = vset.pattern.permute.xlu0 0
    %754 = vperm.xlu0 %753, %v700
    %v755 = vpop.permute.xlu0 %754
    %758 = vset.pattern.permute.xlu0 0
    %759 = vperm.xlu0 %758, %v702
    %v760 = vpop.permute.xlu0 %759
    %763 = vset.pattern.permute.xlu0 0
    %764 = vperm.xlu0 %763, %v704
    %v765 = vpop.permute.xlu0 %764
    %768 = vset.pattern.permute.xlu0 0
    %769 = vperm.xlu0 %768, %v706
    %v770 = vpop.permute.xlu0 %769
    %773 = vset.pattern.permute.xlu0 0
    %774 = vperm.xlu0 %773, %v708
    %v775 = vpop.permute.xlu0 %774
    %778 = vset.pattern.permute.xlu0 0
    %779 = vperm.xlu0 %778, %v710
    %v780 = vpop.permute.xlu0 %779
    %783 = vset.pattern.permute.xlu0 0
    %784 = vperm.xlu0 %783, %v712
    %v785 = vpop.permute.xlu0 %784
    %788 = vset.pattern.permute.xlu0 0
    %789 = vperm.xlu0 %788, %v714
    %v790 = vpop.permute.xlu0 %789
    %793 = vset.pattern.permute.xlu0 0
    %794 = vperm.xlu0 %793, %v716
    %v795 = vpop.permute.xlu0 %794
    %v797 = vmul.f32 %v720, %v433
    %v798 = vmul.f32 %v725, %v439
    %v799 = vmul.f32 %v730, %v445
    %v800 = vmul.f32 %v735, %v451
    %v801 = vmul.f32 %v740, %v457
    %v802 = vmul.f32 %v745, %v463
    %v803 = vmul.f32 %v750, %v469
    %v804 = vmul.f32 %v755, %v475
    %v805 = vmul.f32 %v760, %v481
    %v806 = vmul.f32 %v765, %v487
    %v807 = vmul.f32 %v770, %v493
    %v808 = vmul.f32 %v775, %v499
    %v809 = vmul.f32 %v780, %v505
    %v810 = vmul.f32 %v785, %v511
    %v811 = vmul.f32 %v790, %v517
    %v812 = vmul.f32 %v795, %v523
    %s813 = smul.u32 0, 128
    %v814 = vlaneseq
    %v815 = vshrl.u32 %v814, 7
    %v816 = vadd.s32 %v815, 8
    %v817 = vadd.s32 %v815, 16
    %v818 = vadd.s32 %v815, 24
    %v819 = vadd.s32 %v815, 32
    %v820 = vadd.s32 %v815, 40
    %v821 = vadd.s32 %v815, 48
    %v822 = vadd.s32 %v815, 56
    %v823 = vadd.s32 %v815, 64
    %v824 = vadd.s32 %v815, 72
    %v825 = vadd.s32 %v815, 80
    %v826 = vadd.s32 %v815, 88
    %v827 = vadd.s32 %v815, 96
    %v828 = vadd.s32 %v815, 104
    %v829 = vadd.s32 %v815, 112
    %v830 = vadd.s32 %v815, 120
    %v831 = vstv %s813
    %v832 = vadd.s32 %v815, %v831
    %v833 = vadd.s32 %v816, %v831
    %v834 = vadd.s32 %v817, %v831
    %v835 = vadd.s32 %v818, %v831
    %v836 = vadd.s32 %v819, %v831
    %v837 = vadd.s32 %v820, %v831
    %v838 = vadd.s32 %v821, %v831
    %v839 = vadd.s32 %v822, %v831
    %v840 = vadd.s32 %v823, %v831
    %v841 = vadd.s32 %v824, %v831
    %v842 = vadd.s32 %v825, %v831
    %v843 = vadd.s32 %v826, %v831
    %v844 = vadd.s32 %v827, %v831
    %v845 = vadd.s32 %v828, %v831
    %v846 = vadd.s32 %v829, %v831
    %v847 = vadd.s32 %v830, %v831
    %v848 = vld [vmem:[%s1] sm:$0x1]
    %v849 = vlaneseq
    %v850 = vshrl.u32 %v849, 7
    %v851 = vsub.s32 0, %v850
    %v852 = vrot.slane %v848, %v851
    %vm853 = vcmp.eq.s32.totalorder %v852, %v832
    %vm854 = vcmp.eq.s32.totalorder %v852, %v833
    %vm855 = vcmp.eq.s32.totalorder %v852, %v834
    %vm856 = vcmp.eq.s32.totalorder %v852, %v835
    %vm857 = vcmp.eq.s32.totalorder %v852, %v836
    %vm858 = vcmp.eq.s32.totalorder %v852, %v837
    %vm859 = vcmp.eq.s32.totalorder %v852, %v838
    %vm860 = vcmp.eq.s32.totalorder %v852, %v839
    %vm861 = vcmp.eq.s32.totalorder %v852, %v840
    %vm862 = vcmp.eq.s32.totalorder %v852, %v841
    %vm863 = vcmp.eq.s32.totalorder %v852, %v842
    %vm864 = vcmp.eq.s32.totalorder %v852, %v843
    %vm865 = vcmp.eq.s32.totalorder %v852, %v844
    %vm866 = vcmp.eq.s32.totalorder %v852, %v845
    %vm867 = vcmp.eq.s32.totalorder %v852, %v846
    %vm868 = vcmp.eq.s32.totalorder %v852, %v847
    %v869 = vsel %vm853, 1, 0
    %v870 = vsel %vm854, 1, 0
    %v871 = vsel %vm855, 1, 0
    %v872 = vsel %vm856, 1, 0
    %v873 = vsel %vm857, 1, 0
    %v874 = vsel %vm858, 1, 0
    %v875 = vsel %vm859, 1, 0
    %v876 = vsel %vm860, 1, 0
    %v877 = vsel %vm861, 1, 0
    %v878 = vsel %vm862, 1, 0
    %v879 = vsel %vm863, 1, 0
    %v880 = vsel %vm864, 1, 0
    %v881 = vsel %vm865, 1, 0
    %v882 = vsel %vm866, 1, 0
    %v883 = vsel %vm867, 1, 0
    %v884 = vsel %vm868, 1, 0
    %v885 = vcvt.s32.f32 %v869
    %v886 = vcvt.s32.f32 %v870
    %v887 = vcvt.s32.f32 %v871
    %v888 = vcvt.s32.f32 %v872
    %v889 = vcvt.s32.f32 %v873
    %v890 = vcvt.s32.f32 %v874
    %v891 = vcvt.s32.f32 %v875
    %v892 = vcvt.s32.f32 %v876
    %v893 = vcvt.s32.f32 %v877
    %v894 = vcvt.s32.f32 %v878
    %v895 = vcvt.s32.f32 %v879
    %v896 = vcvt.s32.f32 %v880
    %v897 = vcvt.s32.f32 %v881
    %v898 = vcvt.s32.f32 %v882
    %v899 = vcvt.s32.f32 %v883
    %v900 = vcvt.s32.f32 %v884
    %v901 = vld [vmem:[#allocation2] sm:$0xff]
    %v902 = vld [vmem:[#allocation2 + $0x8] sm:$0xff]
    %v903 = vld [vmem:[#allocation2 + $0x10] sm:$0xff]
    %v904 = vld [vmem:[#allocation2 + $0x18] sm:$0xff]
    %v905 = vld [vmem:[#allocation2 + $0x20] sm:$0xff]
    %v906 = vld [vmem:[#allocation2 + $0x28] sm:$0xff]
    %v907 = vld [vmem:[#allocation2 + $0x30] sm:$0xff]
    %v908 = vld [vmem:[#allocation2 + $0x38] sm:$0xff]
    %v909 = vld [vmem:[#allocation2 + $0x40] sm:$0xff]
    %v910 = vld [vmem:[#allocation2 + $0x48] sm:$0xff]
    %v911 = vld [vmem:[#allocation2 + $0x50] sm:$0xff]
    %v912 = vld [vmem:[#allocation2 + $0x58] sm:$0xff]
    %v913 = vld [vmem:[#allocation2 + $0x60] sm:$0xff]
    %v914 = vld [vmem:[#allocation2 + $0x68] sm:$0xff]
    %v915 = vld [vmem:[#allocation2 + $0x70] sm:$0xff]
    %v916 = vld [vmem:[#allocation2 + $0x78] sm:$0xff]
    %917 = vmatprep.subr.mxu0 0.0
    %918 = vmatpush1.msra.mxu0 %v797
    %919 = vmatprep.subr.mxu0 0.0
    %920 = vmatpush1.msra.mxu0 %v798
    %921 = vmatprep.subr.mxu0 0.0
    %922 = vmatpush1.msra.mxu0 %v799
    %923 = vmatprep.subr.mxu0 0.0
    %924 = vmatpush1.msra.mxu0 %v800
    %925 = vmatprep.subr.mxu0 0.0
    %926 = vmatpush1.msra.mxu0 %v801
    %927 = vmatprep.subr.mxu0 0.0
    %928 = vmatpush1.msra.mxu0 %v802
    %929 = vmatprep.subr.mxu0 0.0
    %930 = vmatpush1.msra.mxu0 %v803
    %931 = vmatprep.subr.mxu0 0.0
    %932 = vmatpush1.msra.mxu0 %v804
    %933 = vmatprep.subr.mxu0 0.0
    %934 = vmatpush1.msra.mxu0 %v805
    %935 = vmatprep.subr.mxu0 0.0
    %936 = vmatpush1.msra.mxu0 %v806
    %937 = vmatprep.subr.mxu0 0.0
    %938 = vmatpush1.msra.mxu0 %v807
    %939 = vmatprep.subr.mxu0 0.0
    %940 = vmatpush1.msra.mxu0 %v808
    %941 = vmatprep.subr.mxu0 0.0
    %942 = vmatpush1.msra.mxu0 %v809
    %943 = vmatprep.subr.mxu0 0.0
    %944 = vmatpush1.msra.mxu0 %v810
    %945 = vmatprep.subr.mxu0 0.0
    %946 = vmatpush1.msra.mxu0 %v811
    %947 = vmatprep.subr.mxu0 0.0
    %948 = vmatpush1.msra.mxu0 %v812
    %949 = vmatprep.subr.mxu0 0.0
    %950 = vmatpush1.msra.mxu0 0.0
    %951 = vmatprep.subr.mxu0 0.0
    %952 = vmatpush1.msra.mxu0 0.0
    %953 = vmatprep.subr.mxu0 0.0
    %954 = vmatpush1.msra.mxu0 0.0
    %955 = vmatprep.subr.mxu0 0.0
    %956 = vmatpush1.msra.mxu0 0.0
    %957 = vmatprep.subr.mxu0 0.0
    %958 = vmatpush1.msra.mxu0 0.0
    %959 = vmatprep.subr.mxu0 0.0
    %960 = vmatpush1.msra.mxu0 0.0
    %961 = vmatprep.subr.mxu0 0.0
    %962 = vmatpush1.msra.mxu0 0.0
    %963 = vmatprep.subr.mxu0 0.0
    %964 = vmatpush1.msra.mxu0 0.0
    %965 = vmatprep.subr.mxu0 0.0
    %966 = vmatpush1.msra.mxu0 0.0
    %967 = vmatprep.subr.mxu0 0.0
    %968 = vmatpush1.msra.mxu0 0.0
    %969 = vmatprep.subr.mxu0 0.0
    %970 = vmatpush1.msra.mxu0 0.0
    %971 = vmatprep.subr.mxu0 0.0
    %972 = vmatpush1.msra.mxu0 0.0
    %973 = vmatprep.subr.mxu0 0.0
    %974 = vmatpush1.msra.mxu0 0.0
    %975 = vmatprep.subr.mxu0 0.0
    %976 = vmatpush1.msra.mxu0 0.0
    %977 = vmatprep.subr.mxu0 0.0
    %978 = vmatpush1.msra.mxu0 0.0
    %979 = vmatprep.subr.mxu0 0.0
    %980 = vmatpush1.msra.mxu0 0.0
    %981 = vmatprep.mubr.f32.mxu0 0.0
    %982 = vmatmul.mubr.f32.gmra.mrb[0].mxu0 %v885
    %v983 = vpop.f32.mrb[0].mxu0
    %v984 = vadd.f32 0.0, %v983
    %v985 = vpop.f32.mrb[0].mxu0
    %986 = vmatprep.mubr.f32.mxu0 0.0
    %987 = vmatmul.mubr.f32.gmra.mrb[0].mxu0 %v886
    %v988 = vpop.f32.mrb[0].mxu0
    %v989 = vadd.f32 0.0, %v988
    %v990 = vpop.f32.mrb[0].mxu0
    %991 = vmatprep.mubr.f32.mxu0 0.0
    %992 = vmatmul.mubr.f32.gmra.mrb[0].mxu0 %v887
    %v993 = vpop.f32.mrb[0].mxu0
    %v994 = vadd.f32 0.0, %v993
    %v995 = vpop.f32.mrb[0].mxu0
    %996 = vmatprep.mubr.f32.mxu0 0.0
    %997 = vmatmul.mubr.f32.gmra.mrb[0].mxu0 %v888
    %v998 = vpop.f32.mrb[0].mxu0
    %v999 = vadd.f32 0.0, %v998
    %v1000 = vpop.f32.mrb[0].mxu0
    %1001 = vmatprep.mubr.f32.mxu0 0.0
    %1002 = vmatmul.mubr.f32.gmra.mrb[0].mxu0 %v889
    %v1003 = vpop.f32.mrb[0].mxu0
    %v1004 = vadd.f32 0.0, %v1003
    %v1005 = vpop.f32.mrb[0].mxu0
    %1006 = vmatprep.mubr.f32.mxu0 0.0
    %1007 = vmatmul.mubr.f32.gmra.mrb[0].mxu0 %v890
    %v1008 = vpop.f32.mrb[0].mxu0
    %v1009 = vadd.f32 0.0, %v1008
    %v1010 = vpop.f32.mrb[0].mxu0
    %1011 = vmatprep.mubr.f32.mxu0 0.0
    %1012 = vmatmul.mubr.f32.gmra.mrb[0].mxu0 %v891
    %v1013 = vpop.f32.mrb[0].mxu0
    %v1014 = vadd.f32 0.0, %v1013
    %v1015 = vpop.f32.mrb[0].mxu0
    %1016 = vmatprep.mubr.f32.mxu0 0.0
    %1017 = vmatmul.mubr.f32.gmra.mrb[0].mxu0 %v892
    %v1018 = vpop.f32.mrb[0].mxu0
    %v1019 = vadd.f32 0.0, %v1018
    %v1020 = vpop.f32.mrb[0].mxu0
    %1021 = vmatprep.mubr.f32.mxu0 0.0
    %1022 = vmatmul.mubr.f32.gmra.mrb[0].mxu0 %v893
    %v1023 = vpop.f32.mrb[0].mxu0
    %v1024 = vadd.f32 0.0, %v1023
    %v1025 = vpop.f32.mrb[0].mxu0
    %1026 = vmatprep.mubr.f32.mxu0 0.0
    %1027 = vmatmul.mubr.f32.gmra.mrb[0].mxu0 %v894
    %v1028 = vpop.f32.mrb[0].mxu0
    %v1029 = vadd.f32 0.0, %v1028
    %v1030 = vpop.f32.mrb[0].mxu0
    %1031 = vmatprep.mubr.f32.mxu0 0.0
    %1032 = vmatmul.mubr.f32.gmra.mrb[0].mxu0 %v895
    %v1033 = vpop.f32.mrb[0].mxu0
    %v1034 = vadd.f32 0.0, %v1033
    %v1035 = vpop.f32.mrb[0].mxu0
    %1036 = vmatprep.mubr.f32.mxu0 0.0
    %1037 = vmatmul.mubr.f32.gmra.mrb[0].mxu0 %v896
    %v1038 = vpop.f32.mrb[0].mxu0
    %v1039 = vadd.f32 0.0, %v1038
    %v1040 = vpop.f32.mrb[0].mxu0
    %1041 = vmatprep.mubr.f32.mxu0 0.0
    %1042 = vmatmul.mubr.f32.gmra.mrb[0].mxu0 %v897
    %v1043 = vpop.f32.mrb[0].mxu0
    %v1044 = vadd.f32 0.0, %v1043
    %v1045 = vpop.f32.mrb[0].mxu0
    %1046 = vmatprep.mubr.f32.mxu0 0.0
    %1047 = vmatmul.mubr.f32.gmra.mrb[0].mxu0 %v898
    %v1048 = vpop.f32.mrb[0].mxu0
    %v1049 = vadd.f32 0.0, %v1048
    %v1050 = vpop.f32.mrb[0].mxu0
    %1051 = vmatprep.mubr.f32.mxu0 0.0
    %1052 = vmatmul.mubr.f32.gmra.mrb[0].mxu0 %v899
    %v1053 = vpop.f32.mrb[0].mxu0
    %v1054 = vadd.f32 0.0, %v1053
    %v1055 = vpop.f32.mrb[0].mxu0
    %1056 = vmatprep.mubr.f32.mxu0 0.0
    %1057 = vmatmul.mubr.f32.gmra.mrb[0].mxu0 %v900
    %v1058 = vpop.f32.mrb[0].mxu0
    %v1059 = vadd.f32 0.0, %v1058
    %v1060 = vpop.f32.mrb[0].mxu0
    %1061 = vdwg.mxu0
    %v1062 = vadd.f32 %v901, %v984
    %v1063 = vadd.f32 %v902, %v989
    %v1064 = vadd.f32 %v903, %v994
    %v1065 = vadd.f32 %v904, %v999
    %v1066 = vadd.f32 %v905, %v1004
    %v1067 = vadd.f32 %v906, %v1009
    %v1068 = vadd.f32 %v907, %v1014
    %v1069 = vadd.f32 %v908, %v1019
    %v1070 = vadd.f32 %v909, %v1024
    %v1071 = vadd.f32 %v910, %v1029
    %v1072 = vadd.f32 %v911, %v1034
    %v1073 = vadd.f32 %v912, %v1039
    %v1074 = vadd.f32 %v913, %v1044
    %v1075 = vadd.f32 %v914, %v1049
    %v1076 = vadd.f32 %v915, %v1054
    %v1077 = vadd.f32 %v916, %v1059
    %1078 = vst [vmem:[#allocation2] sm:$0xff] %v1062
    %1079 = vst [vmem:[#allocation2 + $0x8] sm:$0xff] %v1063
    %1080 = vst [vmem:[#allocation2 + $0x10] sm:$0xff] %v1064
    %1081 = vst [vmem:[#allocation2 + $0x18] sm:$0xff] %v1065
    %1082 = vst [vmem:[#allocation2 + $0x20] sm:$0xff] %v1066
    %1083 = vst [vmem:[#allocation2 + $0x28] sm:$0xff] %v1067
    %1084 = vst [vmem:[#allocation2 + $0x30] sm:$0xff] %v1068
    %1085 = vst [vmem:[#allocation2 + $0x38] sm:$0xff] %v1069
    %1086 = vst [vmem:[#allocation2 + $0x40] sm:$0xff] %v1070
    %1087 = vst [vmem:[#allocation2 + $0x48] sm:$0xff] %v1071
    %1088 = vst [vmem:[#allocation2 + $0x50] sm:$0xff] %v1072
    %1089 = vst [vmem:[#allocation2 + $0x58] sm:$0xff] %v1073
    %1090 = vst [vmem:[#allocation2 + $0x60] sm:$0xff] %v1074
    %1091 = vst [vmem:[#allocation2 + $0x68] sm:$0xff] %v1075
    %1092 = vst [vmem:[#allocation2 + $0x70] sm:$0xff] %v1076
    %1093 = vst [vmem:[#allocation2 + $0x78] sm:$0xff] %v1077
    // Predicated region
    $region34: #{tpu_custom_call.1} parent=1 // pred_check
      %p1094 = pneg %p40
    $region35: #{tpu_custom_call.1} parent=1 // pred_check_branch
      %1096 = sbr.rel (%p1094) target = $region37
    $region36: #{tpu_custom_call.1} parent=1 // pred_region
      %v1097 = vld [vmem:[#allocation2] sm:$0xff]
      %v1098 = vld [vmem:[#allocation2 + $0x8] sm:$0xff]
      %v1099 = vld [vmem:[#allocation2 + $0x10] sm:$0xff]
      %v1100 = vld [vmem:[#allocation2 + $0x18] sm:$0xff]
      %v1101 = vld [vmem:[#allocation2 + $0x20] sm:$0xff]
      %v1102 = vld [vmem:[#allocation2 + $0x28] sm:$0xff]
      %v1103 = vld [vmem:[#allocation2 + $0x30] sm:$0xff]
      %v1104 = vld [vmem:[#allocation2 + $0x38] sm:$0xff]
      %v1105 = vld [vmem:[#allocation2 + $0x40] sm:$0xff]
      %v1106 = vld [vmem:[#allocation2 + $0x48] sm:$0xff]
      %v1107 = vld [vmem:[#allocation2 + $0x50] sm:$0xff]
      %v1108 = vld [vmem:[#allocation2 + $0x58] sm:$0xff]
      %v1109 = vld [vmem:[#allocation2 + $0x60] sm:$0xff]
      %v1110 = vld [vmem:[#allocation2 + $0x68] sm:$0xff]
      %v1111 = vld [vmem:[#allocation2 + $0x70] sm:$0xff]
      %v1112 = vld [vmem:[#allocation2 + $0x78] sm:$0xff]
      %v1113 = vld [vmem:[%s5] sm:$0xff]
      %v1114 = vld [vmem:[%s5 + $0x8] sm:$0xff]
      %v1115 = vld [vmem:[%s5 + $0x10] sm:$0xff]
      %v1116 = vld [vmem:[%s5 + $0x18] sm:$0xff]
      %v1117 = vld [vmem:[%s5 + $0x20] sm:$0xff]
      %v1118 = vld [vmem:[%s5 + $0x28] sm:$0xff]
      %v1119 = vld [vmem:[%s5 + $0x30] sm:$0xff]
      %v1120 = vld [vmem:[%s5 + $0x38] sm:$0xff]
      %v1121 = vld [vmem:[%s5 + $0x40] sm:$0xff]
      %v1122 = vld [vmem:[%s5 + $0x48] sm:$0xff]
      %v1123 = vld [vmem:[%s5 + $0x50] sm:$0xff]
      %v1124 = vld [vmem:[%s5 + $0x58] sm:$0xff]
      %v1125 = vld [vmem:[%s5 + $0x60] sm:$0xff]
      %v1126 = vld [vmem:[%s5 + $0x68] sm:$0xff]
      %v1127 = vld [vmem:[%s5 + $0x70] sm:$0xff]
      %v1128 = vld [vmem:[%s5 + $0x78] sm:$0xff]
      %1129 = vmatprep.subr.mxu0 0.0
      %1130 = vmatpush1.msra.mxu0 %v1113
      %1131 = vmatprep.subr.mxu0 0.0
      %1132 = vmatpush1.msra.mxu0 %v1114
      %1133 = vmatprep.subr.mxu0 0.0
      %1134 = vmatpush1.msra.mxu0 %v1115
      %1135 = vmatprep.subr.mxu0 0.0
      %1136 = vmatpush1.msra.mxu0 %v1116
      %1137 = vmatprep.subr.mxu0 0.0
      %1138 = vmatpush1.msra.mxu0 %v1117
      %1139 = vmatprep.subr.mxu0 0.0
      %1140 = vmatpush1.msra.mxu0 %v1118
      %1141 = vmatprep.subr.mxu0 0.0
      %1142 = vmatpush1.msra.mxu0 %v1119
      %1143 = vmatprep.subr.mxu0 0.0
      %1144 = vmatpush1.msra.mxu0 %v1120
      %1145 = vmatprep.subr.mxu0 0.0
      %1146 = vmatpush1.msra.mxu0 %v1121
      %1147 = vmatprep.subr.mxu0 0.0
      %1148 = vmatpush1.msra.mxu0 %v1122
      %1149 = vmatprep.subr.mxu0 0.0
      %1150 = vmatpush1.msra.mxu0 %v1123
      %1151 = vmatprep.subr.mxu0 0.0
      %1152 = vmatpush1.msra.mxu0 %v1124
      %1153 = vmatprep.subr.mxu0 0.0
      %1154 = vmatpush1.msra.mxu0 %v1125
      %1155 = vmatprep.subr.mxu0 0.0
      %1156 = vmatpush1.msra.mxu0 %v1126
      %1157 = vmatprep.subr.mxu0 0.0
      %1158 = vmatpush1.msra.mxu0 %v1127
      %1159 = vmatprep.subr.mxu0 0.0
      %1160 = vmatpush1.msra.mxu0 %v1128
      %1161 = vmatprep.subr.mxu0 0.0
      %1162 = vmatpush1.msra.mxu0 0.0
      %1163 = vmatprep.subr.mxu0 0.0
      %1164 = vmatpush1.msra.mxu0 0.0
      %1165 = vmatprep.subr.mxu0 0.0
      %1166 = vmatpush1.msra.mxu0 0.0
      %1167 = vmatprep.subr.mxu0 0.0
      %1168 = vmatpush1.msra.mxu0 0.0
      %1169 = vmatprep.subr.mxu0 0.0
      %1170 = vmatpush1.msra.mxu0 0.0
      %1171 = vmatprep.subr.mxu0 0.0
      %1172 = vmatpush1.msra.mxu0 0.0
      %1173 = vmatprep.subr.mxu0 0.0
      %1174 = vmatpush1.msra.mxu0 0.0
      %1175 = vmatprep.subr.mxu0 0.0
      %1176 = vmatpush1.msra.mxu0 0.0
      %1177 = vmatprep.subr.mxu0 0.0
      %1178 = vmatpush1.msra.mxu0 0.0
      %1179 = vmatprep.subr.mxu0 0.0
      %1180 = vmatpush1.msra.mxu0 0.0
      %1181 = vmatprep.subr.mxu0 0.0
      %1182 = vmatpush1.msra.mxu0 0.0
      %1183 = vmatprep.subr.mxu0 0.0
      %1184 = vmatpush1.msra.mxu0 0.0
      %1185 = vmatprep.subr.mxu0 0.0
      %1186 = vmatpush1.msra.mxu0 0.0
      %1187 = vmatprep.subr.mxu0 0.0
      %1188 = vmatpush1.msra.mxu0 0.0
      %1189 = vmatprep.subr.mxu0 0.0
      %1190 = vmatpush1.msra.mxu0 0.0
      %1191 = vmatprep.subr.mxu0 0.0
      %1192 = vmatpush1.msra.mxu0 0.0
      %1193 = vmatprep.mubr.f32.mxu0 0.0
      %1194 = vmatmul.mubr.f32.gmra.mrb[0].mxu0 %v1097
      %v1195 = vpop.f32.mrb[0].mxu0
      %v1196 = vadd.f32 0.0, %v1195
      %v1197 = vpop.f32.mrb[0].mxu0
      %1198 = vmatprep.mubr.f32.mxu0 0.0
      %1199 = vmatmul.mubr.f32.gmra.mrb[0].mxu0 %v1098
      %v1200 = vpop.f32.mrb[0].mxu0
      %v1201 = vadd.f32 0.0, %v1200
      %v1202 = vpop.f32.mrb[0].mxu0
      %1203 = vmatprep.mubr.f32.mxu0 0.0
      %1204 = vmatmul.mubr.f32.gmra.mrb[0].mxu0 %v1099
      %v1205 = vpop.f32.mrb[0].mxu0
      %v1206 = vadd.f32 0.0, %v1205
      %v1207 = vpop.f32.mrb[0].mxu0
      %1208 = vmatprep.mubr.f32.mxu0 0.0
      %1209 = vmatmul.mubr.f32.gmra.mrb[0].mxu0 %v1100
      %v1210 = vpop.f32.mrb[0].mxu0
      %v1211 = vadd.f32 0.0, %v1210
      %v1212 = vpop.f32.mrb[0].mxu0
      %1213 = vmatprep.mubr.f32.mxu0 0.0
      %1214 = vmatmul.mubr.f32.gmra.mrb[0].mxu0 %v1101
      %v1215 = vpop.f32.mrb[0].mxu0
      %v1216 = vadd.f32 0.0, %v1215
      %v1217 = vpop.f32.mrb[0].mxu0
      %1218 = vmatprep.mubr.f32.mxu0 0.0
      %1219 = vmatmul.mubr.f32.gmra.mrb[0].mxu0 %v1102
      %v1220 = vpop.f32.mrb[0].mxu0
      %v1221 = vadd.f32 0.0, %v1220
      %v1222 = vpop.f32.mrb[0].mxu0
      %1223 = vmatprep.mubr.f32.mxu0 0.0
      %1224 = vmatmul.mubr.f32.gmra.mrb[0].mxu0 %v1103
      %v1225 = vpop.f32.mrb[0].mxu0
      %v1226 = vadd.f32 0.0, %v1225
      %v1227 = vpop.f32.mrb[0].mxu0
      %1228 = vmatprep.mubr.f32.mxu0 0.0
      %1229 = vmatmul.mubr.f32.gmra.mrb[0].mxu0 %v1104
      %v1230 = vpop.f32.mrb[0].mxu0
      %v1231 = vadd.f32 0.0, %v1230
      %v1232 = vpop.f32.mrb[0].mxu0
      %1233 = vmatprep.mubr.f32.mxu0 0.0
      %1234 = vmatmul.mubr.f32.gmra.mrb[0].mxu0 %v1105
      %v1235 = vpop.f32.mrb[0].mxu0
      %v1236 = vadd.f32 0.0, %v1235
      %v1237 = vpop.f32.mrb[0].mxu0
      %1238 = vmatprep.mubr.f32.mxu0 0.0
      %1239 = vmatmul.mubr.f32.gmra.mrb[0].mxu0 %v1106
      %v1240 = vpop.f32.mrb[0].mxu0
      %v1241 = vadd.f32 0.0, %v1240
      %v1242 = vpop.f32.mrb[0].mxu0
      %1243 = vmatprep.mubr.f32.mxu0 0.0
      %1244 = vmatmul.mubr.f32.gmra.mrb[0].mxu0 %v1107
      %v1245 = vpop.f32.mrb[0].mxu0
      %v1246 = vadd.f32 0.0, %v1245
      %v1247 = vpop.f32.mrb[0].mxu0
      %1248 = vmatprep.mubr.f32.mxu0 0.0
      %1249 = vmatmul.mubr.f32.gmra.mrb[0].mxu0 %v1108
      %v1250 = vpop.f32.mrb[0].mxu0
      %v1251 = vadd.f32 0.0, %v1250
      %v1252 = vpop.f32.mrb[0].mxu0
      %1253 = vmatprep.mubr.f32.mxu0 0.0
      %1254 = vmatmul.mubr.f32.gmra.mrb[0].mxu0 %v1109
      %v1255 = vpop.f32.mrb[0].mxu0
      %v1256 = vadd.f32 0.0, %v1255
      %v1257 = vpop.f32.mrb[0].mxu0
      %1258 = vmatprep.mubr.f32.mxu0 0.0
      %1259 = vmatmul.mubr.f32.gmra.mrb[0].mxu0 %v1110
      %v1260 = vpop.f32.mrb[0].mxu0
      %v1261 = vadd.f32 0.0, %v1260
      %v1262 = vpop.f32.mrb[0].mxu0
      %1263 = vmatprep.mubr.f32.mxu0 0.0
      %1264 = vmatmul.mubr.f32.gmra.mrb[0].mxu0 %v1111
      %v1265 = vpop.f32.mrb[0].mxu0
      %v1266 = vadd.f32 0.0, %v1265
      %v1267 = vpop.f32.mrb[0].mxu0
      %1268 = vmatprep.mubr.f32.mxu0 0.0
      %1269 = vmatmul.mubr.f32.gmra.mrb[0].mxu0 %v1112
      %v1270 = vpop.f32.mrb[0].mxu0
      %v1271 = vadd.f32 0.0, %v1270
      %v1272 = vpop.f32.mrb[0].mxu0
      %1273 = vdwg.mxu0
      %1274 = vst [vmem:[#allocation7] sm:$0xff] %v1196
      %1275 = vst [vmem:[#allocation7 + $0x8] sm:$0xff] %v1201
      %1276 = vst [vmem:[#allocation7 + $0x10] sm:$0xff] %v1206
      %1277 = vst [vmem:[#allocation7 + $0x18] sm:$0xff] %v1211
      %1278 = vst [vmem:[#allocation7 + $0x20] sm:$0xff] %v1216
      %1279 = vst [vmem:[#allocation7 + $0x28] sm:$0xff] %v1221
      %1280 = vst [vmem:[#allocation7 + $0x30] sm:$0xff] %v1226
      %1281 = vst [vmem:[#allocation7 + $0x38] sm:$0xff] %v1231
      %1282 = vst [vmem:[#allocation7 + $0x40] sm:$0xff] %v1236
      %1283 = vst [vmem:[#allocation7 + $0x48] sm:$0xff] %v1241
      %1284 = vst [vmem:[#allocation7 + $0x50] sm:$0xff] %v1246
      %1285 = vst [vmem:[#allocation7 + $0x58] sm:$0xff] %v1251
      %1286 = vst [vmem:[#allocation7 + $0x60] sm:$0xff] %v1256
      %1287 = vst [vmem:[#allocation7 + $0x68] sm:$0xff] %v1261
      %1288 = vst [vmem:[#allocation7 + $0x70] sm:$0xff] %v1266
      %1289 = vst [vmem:[#allocation7 + $0x78] sm:$0xff] %v1271
    $region37: #{tpu_custom_call.1} parent=1 // pred_fallthru
      _
    // Predicated region
    $region38: #{tpu_custom_call.1} parent=1 // pred_check
      _
    $region39: #{tpu_custom_call.1} parent=1 // pred_check_branch
      %1291 = sbr.rel (0) target = $region41
    $region40: #{tpu_custom_call.1} parent=1 // pred_region
      %s1293 = ssub.s32 2048, 2048
      %1294 = vsyncadd [#allocation6], %s1293
      %s1295 = sshll.u32 [#allocation7], 4
      %s1296 = int_to_ptr.vmem [resolvable:$true] %s1295
      %1301 = dma.vmem_to_hbm [thread:$0]  %s1296, 2048, %s6, [#allocation6], 128, 128, 8
    $region41: #{tpu_custom_call.1} parent=1 // pred_fallthru
      _
    // Predicated region
    $region42: #{tpu_custom_call.1} parent=1 // pred_check
      _
    $region43: #{tpu_custom_call.1} parent=1 // pred_check_branch
      %1303 = sbr.rel (0) target = $region45
    $region44: #{tpu_custom_call.1} parent=1 // pred_region
      %1304 = dma.done [#allocation6], 2048
    $region45: #{tpu_custom_call.1} parent=1 // pred_fallthru
      _
    %1305 = vsyncpa [#allocation5], 1
    %1306 = vsyncpa [#allocation6], 1

</llo_original>
